<compile_context>
chip_gen: v5e
topology: v5e:2x2
jax: 0.10.0
libtpu: 0.0.40
codegen_flags: <defaults>
</compile_context>

<pallas_src>
import jax
import jax.numpy as jnp
from jax import lax
from jax.experimental import pallas as pl
from jax.experimental.pallas import tpu as pltpu

_BF16 = jnp.bfloat16


def _softmax_lastdim(x):
    m = jnp.max(x, axis=-1, keepdims=True)
    e = jnp.exp(x - m)
    return e / jnp.sum(e, axis=-1, keepdims=True)


def _gelu(x):
    # tanh-approximate GELU: transcendental runs on the EUP slot (free) instead
    # of an erf polynomial on the VALU.
    # TODO(synk): torch.nn.GELU() default is the exact erf form; the tanh
    # approximation deviates slightly (validate with relaxed tolerance).
    return jax.nn.gelu(x, approximate=True)


def _mm(a, b):
    # bf16 MXU matmul with f32 accumulation
    return jnp.dot(a.astype(_BF16), b.astype(_BF16),
                   preferred_element_type=jnp.float32)


def _mm_nt(a, b):
    # a @ b.T without materializing the transpose: contract the last dims
    return lax.dot_general(a.astype(_BF16), b.astype(_BF16),
                           (((1,), (1,)), ((), ())),
                           preferred_element_type=jnp.float32)


def _full_spec(shape):
    nd = len(shape)
    return pl.BlockSpec(shape, lambda *_: (0,) * nd)


def _derive_vmem_limit():
    # Generation-aware VMEM cap: ~75% of physical per-core VMEM
    # (~48 MiB on v7x's 64 MiB, ~96 MiB on v5e/v6e's 128 MiB).
    try:
        phys = int(pltpu.get_tpu_info().vmem_capacity_bytes)
    except Exception:  # conservative fallback if the query is unavailable
        phys = 128 * 1024 * 1024
    return int(min(phys * 3 // 4, 100 * 1024 * 1024))


# -----------------------------------------------------------------------------
# Kernel 1: two-way transformer stand-in + fused heads epilogue (IoU head and
# per-mask-token hypernetwork MLPs run while `hs` is still resident in VMEM).
# -----------------------------------------------------------------------------
def _tx_heads_kernel(tok_ref, src_ref, pos_ref,
                     wkq2_ref, wv_ref, wtok_ref,
                     hw1_ref, hb1_ref, hw2_ref, hb2_ref, hw3_ref, hb3_ref,
                     iw1_ref, ib1_ref, iw2_ref, ib2_ref, iw3_ref, ib3_ref,
                     hs_ref, src_out_ref, hyper_ref, iou_ref):
    tok = tok_ref[0]                                  # (T, C) f32 (tiny)
    src = src_ref[0]                                  # (L, C) bf16
    pos = pos_ref[0]                                  # (L, C) bf16
    c = tok.shape[-1]
    scale = 1.0 / (float(c) ** 0.5)
    src_pe = src + pos                                # bf16 elementwise

    # image-side projections: k and q2 fused into one (L,C)@(C,2C) matmul;
    # per-stage (L, .) results are recast to bf16 immediately (f32 only inside
    # dot accumulation) to keep VMEM/vreg pressure low (v7x: 64 MiB VMEM).
    kq2 = _mm(src_pe, wkq2_ref[...]).astype(_BF16)    # (L, 2C)
    k = kq2[:, :c]
    q2 = kq2[:, c:]
    v = _mm(src, wv_ref[...]).astype(_BF16)           # (L, C)

    # ---- tokens attend to image ---------------------------------------------
    q = _mm(tok, wtok_ref[0])                         # (T, C) f32
    attn = _softmax_lastdim(_mm_nt(q, k) * scale)     # (T, L) f32, lane-dense
    hs = tok + _mm(_mm(attn, v), wtok_ref[1])         # (T, C) f32

    # ---- image attends to tokens (transposed, lane-dense scores) ------------
    k2 = _mm(hs, wtok_ref[2]).astype(_BF16)           # (T, C)
    v2 = _mm(hs, wtok_ref[3])                         # (T, C) f32
    v2p = _mm(v2, wtok_ref[4]).astype(_BF16)          # (T, C) reassociated out-proj
    # scores_t[t, l] = k2[t] . q2[l]  -> softmax over the token (sublane) axis
    scores_t = _mm_nt(k2, q2) * scale                 # (T, L) f32, dense layout
    m2 = jnp.max(scores_t, axis=0, keepdims=True)
    e2 = jnp.exp(scores_t - m2)
    attn2_t = (e2 / jnp.sum(e2, axis=0, keepdims=True)).astype(_BF16)  # (T, L)
    # src_new = src + attn2 @ (v2 @ W_out): contract the T axis directly
    proj = lax.dot_general(attn2_t, v2p, (((0,), (0,)), ((), ())),
                           preferred_element_type=jnp.float32)         # (L, C)
    src_out_ref[0] = src + proj.astype(_BF16)

    hs_ref[0] = hs

    # ---- IoU prediction head (3 layers, ReLU) on the iou token --------------
    x = hs[0:1, :].astype(_BF16)                      # (1, C)
    x = jnp.maximum(
        jnp.dot(x, iw1_ref[...], preferred_element_type=jnp.float32)
        + ib1_ref[...], 0.0)
    x = jnp.maximum(
        jnp.dot(x.astype(_BF16), iw2_ref[...], preferred_element_type=jnp.float32)
        + ib2_ref[...], 0.0)
    iou_ref[0] = jnp.dot(x.astype(_BF16), iw3_ref[...],
                         preferred_element_type=jnp.float32) + ib3_ref[...]

    # ---- hypernetwork MLPs (one per mask token), direct row writes ----------
    # TODO(synk): batching the M per-token MLPs via block-diagonal weights would
    # trim a few idle MXU cycles; low priority (FLOPs are tiny).
    m_tok = hw1_ref.shape[0]
    for i in range(m_tok):
        t = hs[1 + i:2 + i, :].astype(_BF16)          # (1, C)
        h = jnp.maximum(
            jnp.dot(t, hw1_ref[i], preferred_element_type=jnp.float32)
            + hb1_ref[i:i + 1, :], 0.0)
        h = jnp.maximum(
            jnp.dot(h.astype(_BF16), hw2_ref[i], preferred_element_type=jnp.float32)
            + hb2_ref[i:i + 1, :], 0.0)
        o = jnp.dot(h.astype(_BF16), hw3_ref[i], preferred_element_type=jnp.float32) \
            + hb3_ref[i:i + 1, :]                     # (1, C8)
        hyper_ref[0, i:i + 1, :] = o


# -----------------------------------------------------------------------------
# Kernel 2: output_upscaling (ConvTranspose2d k=2 s=2 -> LayerNorm2d -> GELU ->
# ConvTranspose2d k=2 s=2 -> GELU) + masks = hyper_in @ upscaled.
# Both transposed convolutions are fused into wide matmuls; all four conv-2
# offsets are produced by ONE contraction per d against a block-diagonal hyper
# slab (4*M x 4*C8), emitting a sublane/lane-dense (4*M, Lt) result per d.
# -----------------------------------------------------------------------------
def _upscale_mask_kernel(src_ref, w1_ref, b1_ref, lnw_ref, lnb_ref,
                         w2_ref, b2_ref, hyperblk_ref, parts_ref):
    x = src_ref[0]                                    # (Lt, C) bf16
    hyper_blk = hyperblk_ref[0]                       # (4*M, 4*C8) bf16 block-diag
    c4 = lnw_ref.shape[-1]
    rows = hyper_blk.shape[0]                         # 4*M
    eps = 1e-6
    lnw = lnw_ref[...].astype(_BF16)
    lnb = lnb_ref[...].astype(_BF16)

    # fused first transposed conv: one (Lt, C) @ (C, 4*C4) matmul (f32 acc)
    y_all = jnp.dot(x, w1_ref[...], preferred_element_type=jnp.float32) + b1_ref[...]

    for d in range(4):                                # offsets (di, dj) of conv 1
        # TODO(synk): with C4 < 128 the odd-d slices start mid-vreg; keeping the
        # wide conv-1 matmul was judged the better trade-off than lane padding.
        y = y_all[:, d * c4:(d + 1) * c4]             # (Lt, C4) f32
        # LayerNorm2d over channels: f32 statistics, bf16 affine + GELU
        u = jnp.mean(y, axis=-1, keepdims=True)
        var = jnp.mean(jnp.square(y - u), axis=-1, keepdims=True)
        y = ((y - u) * lax.rsqrt(var + eps)).astype(_BF16)
        y = _gelu(y * lnw + lnb)                      # bf16, tanh-GELU on EUP

        # fused second transposed conv: one (Lt, C4) @ (C4, 4*C8) matmul
        z = jnp.dot(y, w2_ref[...], preferred_element_type=jnp.float32) + b2_ref[...]
        z = _gelu(z.astype(_BF16))                    # (Lt, 4*C8) bf16

        # all 4 conv-2 offsets in one K=4*C8 contraction against the
        # block-diagonal hyper slab -> (4*M, Lt), sublane + lane dense.
        parts_ref[0, d * rows:(d + 1) * rows, :] = lax.dot_general(
            hyper_blk, z, (((1,), (1,)), ((), ())),
            preferred_element_type=jnp.float32)


class MaskDecoderPallas:
    """Pallas/TPU implementation of SAM2 MaskDecoder (default config:
    pred_obj_scores=False, use_high_res_features=False,
    dynamic_multimask_via_stability=False)."""

    def __init__(self, *, transformer_dim, num_multimask_outputs=3,
                 iou_head_depth=3, iou_head_hidden_dim=256, key=None):
        assert iou_head_depth == 3, "kernel hardcodes a 3-layer IoU head"
        C = transformer_dim
        self.C, self.C4, self.C8 = C, C // 4, C // 8
        self.M = num_multimask_outputs + 1
        self.Hh = iou_head_hidden_dim
        self._vmem_limit = _derive_vmem_limit()

        keys = iter(jax.random.split(key, 32))
        rnd = lambda shape: 0.05 * jax.random.normal(next(keys), shape, jnp.float32)

        # token embeddings
        self.iou_token = rnd((1, C))
        self.mask_tokens = rnd((self.M, C))

        # transformer (stand-in) projections
        tx = rnd((8, C, C))
        # k (from src+pos) and q2 (from src+pos) fused into one (C, 2C) slab
        self.txw_kq2 = jnp.concatenate([tx[1], tx[4]], axis=1).astype(_BF16)
        self.txw_v = tx[2].astype(_BF16)                           # v from src
        # token-side weights: [W_q, W_out1, W_k2, W_v2, W_out2]
        self.txw_tok = jnp.stack([tx[0], tx[3], tx[5], tx[6], tx[7]]).astype(_BF16)

        # output_upscaling: ConvTranspose2d weights -> per-offset matrices,
        # concatenated along the output dim (column block d/e = offset d/e).
        wct1 = rnd((C, self.C4, 2, 2))                    # torch (Cin,Cout,kH,kW)
        w1_per = jnp.transpose(wct1, (2, 3, 0, 1)).reshape(4, C, self.C4)
        self.w1cat = jnp.transpose(w1_per, (1, 0, 2)).reshape(C, 4 * self.C4).astype(_BF16)
        b1 = rnd((1, self.C4))
        self.b1cat = jnp.tile(b1, (1, 4))
        self.ln_w = jnp.ones((1, self.C4), jnp.float32)   # LayerNorm2d init
        self.ln_b = jnp.zeros((1, self.C4), jnp.float32)
        wct2 = rnd((self.C4, self.C8, 2, 2))
        w2_per = jnp.transpose(wct2, (2, 3, 0, 1)).reshape(4, self.C4, self.C8)
        self.w2cat = jnp.transpose(w2_per, (1, 0, 2)).reshape(self.C4, 4 * self.C8).astype(_BF16)
        b2 = rnd((1, self.C8))
        self.b2cat = jnp.tile(b2, (1, 4))

        # hypernetwork MLPs (stacked over M mask tokens), bf16 weights, f32 bias
        self.hw1, self.hb1 = rnd((self.M, C, C)).astype(_BF16), rnd((self.M, C))
        self.hw2, self.hb2 = rnd((self.M, C, C)).astype(_BF16), rnd((self.M, C))
        self.hw3, self.hb3 = rnd((self.M, C, self.C8)).astype(_BF16), rnd((self.M, self.C8))
        # IoU prediction head
        self.iw1, self.ib1 = rnd((C, self.Hh)).astype(_BF16), rnd((1, self.Hh))
        self.iw2, self.ib2 = rnd((self.Hh, self.Hh)).astype(_BF16), rnd((1, self.Hh))
        self.iw3, self.ib3 = rnd((self.Hh, self.M)).astype(_BF16), rnd((1, self.M))

    # --- pallas_call wrappers -------------------------------------------------
    def _run_tx_heads(self, tokens, src_flat, pos_flat):
        B, T, C = tokens.shape
        L = src_flat.shape[1]
        M, C8 = self.M, self.C8
        # TODO(synk): for B == 1 on v7x the second TensorCore idles during this
        # call; splitting the image-side branch over an L axis is future work.
        weights = (self.txw_kq2, self.txw_v, self.txw_tok,
                   self.hw1, self.hb1, self.hw2, self.hb2, self.hw3, self.hb3,
                   self.iw1, self.ib1, self.iw2, self.ib2, self.iw3, self.ib3)
        in_specs = [pl.BlockSpec((1, T, C), lambda b: (b, 0, 0)),
                    pl.BlockSpec((1, L, C), lambda b: (b, 0, 0)),
                    pl.BlockSpec((1, L, C), lambda b: (0, 0, 0))]
        in_specs += [_full_spec(w.shape) for w in weights]
        hs, src_out, hyper_in, iou = pl.pallas_call(
            _tx_heads_kernel,
            out_shape=(jax.ShapeDtypeStruct((B, T, C), jnp.float32),
                       jax.ShapeDtypeStruct((B, L, C), _BF16),
                       jax.ShapeDtypeStruct((B, M, C8), jnp.float32),
                       jax.ShapeDtypeStruct((B, 1, M), jnp.float32)),
            grid=(B,),
            in_specs=in_specs,
            out_specs=(pl.BlockSpec((1, T, C), lambda b: (b, 0, 0)),
                       pl.BlockSpec((1, L, C), lambda b: (b, 0, 0)),
                       pl.BlockSpec((1, M, C8), lambda b: (b, 0, 0)),
                       pl.BlockSpec((1, 1, M), lambda b: (b, 0, 0))),
            compiler_params=pltpu.CompilerParams(
                dimension_semantics=("parallel",),
                vmem_limit_bytes=self._vmem_limit),
        )(tokens, src_flat, pos_flat, *weights)
        return hs, src_out, hyper_in, iou[:, 0, :]

    @staticmethod
    def _pick_l_tile(L, B):
        # Prefer the largest lane-dense (multiple-of-128) spatial tile; with a
        # single batch keep >=2 tiles so v7x's second TensorCore gets work.
        max_t = L if B > 1 else max(L // 2, 128)
        for t in (4096, 2048, 1024, 512, 256, 128):
            if t <= max_t and L % t == 0:
                return t
        return L

    def _run_upscale_masks(self, src_flat, hyper_in, H, W):
        B, L, C = src_flat.shape
        M, C8 = self.M, self.C8
        lt = self._pick_l_tile(L, B)
        # block-diagonal hyper weights: (4*M, 4*C8) per batch, so every d-offset
        # needs only one K=4*C8 contraction covering all 4 conv-2 offsets.
        eye4 = jnp.eye(4, dtype=jnp.float32)
        hyper_blk = jnp.einsum('ef,bmc->bemfc', eye4, hyper_in).reshape(
            B, 4 * M, 4 * C8).astype(_BF16)
        in_specs = [pl.BlockSpec((1, lt, C), lambda b, l: (b, l, 0)),
                    _full_spec(self.w1cat.shape), _full_spec(self.b1cat.shape),
                    _full_spec(self.ln_w.shape), _full_spec(self.ln_b.shape),
                    _full_spec(self.w2cat.shape), _full_spec(self.b2cat.shape),
                    pl.BlockSpec((1, 4 * M, 4 * C8), lambda b, l: (b, 0, 0))]
        parts = pl.pallas_call(
            _upscale_mask_kernel,
            out_shape=jax.ShapeDtypeStruct((B, 16 * M, L), jnp.float32),
            grid=(B, L // lt),
            in_specs=in_specs,
            out_specs=pl.BlockSpec((1, 16 * M, lt), lambda b, l: (b, 0, l)),
            compiler_params=pltpu.CompilerParams(
                dimension_semantics=("parallel", "parallel"),
                vmem_limit_bytes=self._vmem_limit),
        )(src_flat, self.w1cat, self.b1cat, self.ln_w, self.ln_b,
          self.w2cat, self.b2cat, hyper_blk)
        # reassemble ConvTranspose2d spatial interleave:
        # row index = (di*2+dj)*4M + (ei*2+ej)*M + m ; column = i*W + j
        # masks[b, m, 4i+2di+ei, 4j+2dj+ej] = parts[b, row, i*W+j]
        parts = parts.reshape(B, 2, 2, 2, 2, M, H, W)           # (b,di,dj,ei,ej,m,i,j)
        masks = jnp.transpose(parts, (0, 5, 6, 1, 3, 7, 2, 4))  # (b,m,i,di,ei,j,dj,ej)
        return masks.reshape(B, M, 4 * H, 4 * W)

    # --- forward semantics ------------------------------------------------------
    def predict_masks(self, image_embeddings, image_pe,
                      sparse_prompt_embeddings, dense_prompt_embeddings,
                      repeat_image):
        B_tok = sparse_prompt_embeddings.shape[0]
        output_tokens = jnp.concatenate([self.iou_token, self.mask_tokens], axis=0)
        output_tokens = jnp.broadcast_to(output_tokens[None],
                                         (B_tok,) + output_tokens.shape)
        tokens = jnp.concatenate([output_tokens, sparse_prompt_embeddings], axis=1)

        if repeat_image:
            src = jnp.repeat(image_embeddings, B_tok, axis=0)
        else:
            assert image_embeddings.shape[0] == B_tok
            src = image_embeddings
        src = src + dense_prompt_embeddings
        assert image_pe.shape[0] == 1
        b, c, h, w = src.shape
        # channels-last flattened slabs; bf16 halves DMA/VMEM of the big inputs
        src_flat = jnp.transpose(src, (0, 2, 3, 1)).reshape(b, h * w, c).astype(_BF16)
        pos_flat = jnp.transpose(image_pe, (0, 2, 3, 1)).reshape(1, h * w, c).astype(_BF16)

        hs, src_flat, hyper_in, iou_pred = self._run_tx_heads(tokens, src_flat, pos_flat)
        mask_tokens_out = hs[:, 1:1 + self.M, :]
        masks = self._run_upscale_masks(src_flat, hyper_in, h, w)
        # pred_obj_scores=False -> constant object score logits
        object_score_logits = 10.0 * jnp.ones((iou_pred.shape[0], 1), jnp.float32)
        return masks, iou_pred, mask_tokens_out, object_score_logits

    def __call__(self, image_embeddings, image_pe, sparse_prompt_embeddings,
                 dense_prompt_embeddings, multimask_output, repeat_image):
        masks, iou_pred, mask_tokens_out, object_score_logits = self.predict_masks(
            image_embeddings, image_pe, sparse_prompt_embeddings,
            dense_prompt_embeddings, repeat_image)
        if multimask_output:
            masks = masks[:, 1:, :, :]
            iou_pred = iou_pred[:, 1:]
        else:
            # TODO(synk): dynamic_multimask_via_stability branch not implemented
            # (default flag is False in the reference module).
            masks = masks[:, 0:1, :, :]
            iou_pred = iou_pred[:, 0:1]
        sam_tokens_out = mask_tokens_out[:, 0:1]  # use_multimask_token_for_obj_ptr=False
        return masks, iou_pred, sam_tokens_out, object_score_logits


if __name__ == "__main__":
    key = jax.random.PRNGKey(0)
    B, C, H, W = 2, 32, 8, 8
    N_sparse = 3
    k1, k2, k3, k4, kp = jax.random.split(key, 5)
    image_embeddings = jax.random.normal(k1, (B, C, H, W), jnp.float32)
    image_pe = jax.random.normal(k2, (1, C, H, W), jnp.float32)
    sparse_prompts = jax.random.normal(k3, (B, N_sparse, C), jnp.float32)
    dense_prompts = jax.random.normal(k4, (B, C, H, W), jnp.float32)

    decoder = MaskDecoderPallas(transformer_dim=C, num_multimask_outputs=3,
                                iou_head_depth=3, iou_head_hidden_dim=32, key=kp)

    masks, iou_pred, sam_tokens_out, obj_scores = decoder(
        image_embeddings, image_pe, sparse_prompts, dense_prompts,
        multimask_output=True, repeat_image=False)
    jax.block_until_ready((masks, iou_pred, sam_tokens_out, obj_scores))

    assert masks.shape == (B, 3, 4 * H, 4 * W)
    assert iou_pred.shape == (B, 3)
    assert sam_tokens_out.shape == (B, 1, C)
    assert obj_scores.shape == (B, 1)
    print("KERNEL_OK")
</pallas_src>

<mosaic_0001>
module attributes {stable_mosaic.version = 11 : i64} {
  func.func @_tx_heads_kernel(%arg0: i32, %arg1: memref<1x8x32xf32, #tpu.memory_space<vmem>>, %arg2: memref<1x64x32xbf16, #tpu.memory_space<vmem>>, %arg3: memref<1x64x32xbf16, #tpu.memory_space<vmem>>, %arg4: memref<32x64xbf16, #tpu.memory_space<vmem>>, %arg5: memref<32x32xbf16, #tpu.memory_space<vmem>>, %arg6: memref<5x32x32xbf16, #tpu.memory_space<vmem>>, %arg7: memref<4x32x32xbf16, #tpu.memory_space<vmem>>, %arg8: memref<4x32xf32, #tpu.memory_space<vmem>>, %arg9: memref<4x32x32xbf16, #tpu.memory_space<vmem>>, %arg10: memref<4x32xf32, #tpu.memory_space<vmem>>, %arg11: memref<4x32x4xbf16, #tpu.memory_space<vmem>>, %arg12: memref<4x4xf32, #tpu.memory_space<vmem>>, %arg13: memref<32x32xbf16, #tpu.memory_space<vmem>>, %arg14: memref<1x32xf32, #tpu.memory_space<vmem>>, %arg15: memref<32x32xbf16, #tpu.memory_space<vmem>>, %arg16: memref<1x32xf32, #tpu.memory_space<vmem>>, %arg17: memref<32x4xbf16, #tpu.memory_space<vmem>>, %arg18: memref<1x4xf32, #tpu.memory_space<vmem>>, %arg19: memref<1x8x32xf32, #tpu.memory_space<vmem>>, %arg20: memref<1x64x32xbf16, #tpu.memory_space<vmem>>, %arg21: memref<1x4x4xf32, #tpu.memory_space<vmem>>, %arg22: memref<1x1x4xf32, #tpu.memory_space<vmem>>) attributes {dimension_semantics = [#tpu.dimension_semantics<parallel>], iteration_bounds = array<i64: 2>, scalar_prefetch = 0 : i64, scratch_operands = 0 : i64, tpu.core_type = #tpu.core_type<tc>, window_params = [{transform_indices = @transform_0, window_bounds = array<i64: 1, 8, 32>}, {transform_indices = @transform_1, window_bounds = array<i64: 1, 64, 32>}, {pipeline_mode = #tpu.pipeline_mode<synchronous>, transform_indices = @transform_2, window_bounds = array<i64: 1, 64, 32>}, {pipeline_mode = #tpu.pipeline_mode<synchronous>, transform_indices = @transform_3, window_bounds = array<i64: 32, 64>}, {pipeline_mode = #tpu.pipeline_mode<synchronous>, transform_indices = @transform_4, window_bounds = array<i64: 32, 32>}, {pipeline_mode = #tpu.pipeline_mode<synchronous>, transform_indices = @transform_5, window_bounds = array<i64: 5, 32, 32>}, {pipeline_mode = #tpu.pipeline_mode<synchronous>, transform_indices = @transform_6, window_bounds = array<i64: 4, 32, 32>}, {pipeline_mode = #tpu.pipeline_mode<synchronous>, transform_indices = @transform_7, window_bounds = array<i64: 4, 32>}, {pipeline_mode = #tpu.pipeline_mode<synchronous>, transform_indices = @transform_8, window_bounds = array<i64: 4, 32, 32>}, {pipeline_mode = #tpu.pipeline_mode<synchronous>, transform_indices = @transform_9, window_bounds = array<i64: 4, 32>}, {pipeline_mode = #tpu.pipeline_mode<synchronous>, transform_indices = @transform_10, window_bounds = array<i64: 4, 32, 4>}, {pipeline_mode = #tpu.pipeline_mode<synchronous>, transform_indices = @transform_11, window_bounds = array<i64: 4, 4>}, {pipeline_mode = #tpu.pipeline_mode<synchronous>, transform_indices = @transform_12, window_bounds = array<i64: 32, 32>}, {pipeline_mode = #tpu.pipeline_mode<synchronous>, transform_indices = @transform_13, window_bounds = array<i64: 1, 32>}, {pipeline_mode = #tpu.pipeline_mode<synchronous>, transform_indices = @transform_14, window_bounds = array<i64: 32, 32>}, {pipeline_mode = #tpu.pipeline_mode<synchronous>, transform_indices = @transform_15, window_bounds = array<i64: 1, 32>}, {pipeline_mode = #tpu.pipeline_mode<synchronous>, transform_indices = @transform_16, window_bounds = array<i64: 32, 4>}, {pipeline_mode = #tpu.pipeline_mode<synchronous>, transform_indices = @transform_17, window_bounds = array<i64: 1, 4>}, {transform_indices = @transform_18, window_bounds = array<i64: 1, 8, 32>}, {transform_indices = @transform_19, window_bounds = array<i64: 1, 64, 32>}, {transform_indices = @transform_20, window_bounds = array<i64: 1, 4, 4>}, {transform_indices = @transform_21, window_bounds = array<i64: 1, 1, 4>}]} {
    %c0 = arith.constant 0 : index
    %c0_0 = arith.constant 0 : index
    %c0_1 = arith.constant 0 : index
    %0 = vector.load %arg1[%c0, %c0_0, %c0_1] : memref<1x8x32xf32, #tpu.memory_space<vmem>>, vector<1x8x32xf32>
    %1 = vector.shape_cast %0 : vector<1x8x32xf32> to vector<8x32xf32>
    %c0_2 = arith.constant 0 : index
    %c0_3 = arith.constant 0 : index
    %c0_4 = arith.constant 0 : index
    %2 = vector.load %arg2[%c0_2, %c0_3, %c0_4] : memref<1x64x32xbf16, #tpu.memory_space<vmem>>, vector<1x64x32xbf16>
    %3 = vector.shape_cast %2 : vector<1x64x32xbf16> to vector<64x32xbf16>
    %c0_5 = arith.constant 0 : index
    %c0_6 = arith.constant 0 : index
    %c0_7 = arith.constant 0 : index
    %4 = vector.load %arg3[%c0_5, %c0_6, %c0_7] : memref<1x64x32xbf16, #tpu.memory_space<vmem>>, vector<1x64x32xbf16>
    %5 = vector.shape_cast %4 : vector<1x64x32xbf16> to vector<64x32xbf16>
    %6 = arith.addf %3, %5 : vector<64x32xbf16>
    %c0_8 = arith.constant 0 : index
    %c0_9 = arith.constant 0 : index
    %7 = vector.load %arg4[%c0_8, %c0_9] : memref<32x64xbf16, #tpu.memory_space<vmem>>, vector<32x64xbf16>
    %cst = arith.constant dense<0.000000e+00> : vector<64x64xf32>
    %8 = tpu.matmul %6, %7, %cst {dimension_numbers = #tpu.dot_dimension_numbers<[1], [0], [0], [1], [0, 0, 1, 1], [], []>} : vector<64x32xbf16>, vector<32x64xbf16>, vector<64x64xf32> -> vector<64x64xf32>
    %9 = arith.truncf %8 : vector<64x64xf32> to vector<64x64xbf16>
    %10 = vector.extract_strided_slice %9 {offsets = [0, 0], sizes = [64, 32], strides = [1, 1]} : vector<64x64xbf16> to vector<64x32xbf16>
    %11 = vector.extract_strided_slice %9 {offsets = [0, 32], sizes = [64, 32], strides = [1, 1]} : vector<64x64xbf16> to vector<64x32xbf16>
    %c0_10 = arith.constant 0 : index
    %c0_11 = arith.constant 0 : index
    %12 = vector.load %arg5[%c0_10, %c0_11] : memref<32x32xbf16, #tpu.memory_space<vmem>>, vector<32x32xbf16>
    %cst_12 = arith.constant dense<0.000000e+00> : vector<64x32xf32>
    %13 = tpu.matmul %3, %12, %cst_12 {dimension_numbers = #tpu.dot_dimension_numbers<[1], [0], [0], [1], [0, 0, 1, 1], [], []>} : vector<64x32xbf16>, vector<32x32xbf16>, vector<64x32xf32> -> vector<64x32xf32>
    %14 = arith.truncf %13 : vector<64x32xf32> to vector<64x32xbf16>
    %c0_13 = arith.constant 0 : index
    %c0_14 = arith.constant 0 : index
    %c0_15 = arith.constant 0 : index
    %15 = vector.load %arg6[%c0_13, %c0_14, %c0_15] : memref<5x32x32xbf16, #tpu.memory_space<vmem>>, vector<1x32x32xbf16>
    %16 = vector.shape_cast %15 : vector<1x32x32xbf16> to vector<32x32xbf16>
    %17 = arith.truncf %1 : vector<8x32xf32> to vector<8x32xbf16>
    %cst_16 = arith.constant dense<0.000000e+00> : vector<8x32xf32>
    %18 = tpu.matmul %17, %16, %cst_16 {dimension_numbers = #tpu.dot_dimension_numbers<[1], [0], [0], [1], [0, 0, 1, 1], [], []>} : vector<8x32xbf16>, vector<32x32xbf16>, vector<8x32xf32> -> vector<8x32xf32>
    %19 = arith.truncf %18 : vector<8x32xf32> to vector<8x32xbf16>
    %cst_17 = arith.constant dense<0.000000e+00> : vector<8x64xf32>
    %20 = tpu.matmul %19, %10, %cst_17 {dimension_numbers = #tpu.dot_dimension_numbers<[1], [1], [0], [0], [0, 0, 1, 0], [], []>} : vector<8x32xbf16>, vector<64x32xbf16>, vector<8x64xf32> -> vector<8x64xf32>
    %cst_18 = arith.constant 0.176776692 : f32
    %21 = vector.broadcast %cst_18 : f32 to vector<8x64xf32>
    %22 = arith.mulf %20, %21 : vector<8x64xf32>
    %cst_19 = arith.constant dense<0xFF800000> : vector<8xf32>
    %23 = vector.multi_reduction <maximumf>, %22, %cst_19 [1] : vector<8x64xf32> to vector<8xf32>
    %24 = vector.shape_cast %23 : vector<8xf32> to vector<8x1xf32>
    %25 = vector.broadcast %24 : vector<8x1xf32> to vector<8x64xf32>
    %26 = arith.subf %22, %25 : vector<8x64xf32>
    %27 = math.exp %26 : vector<8x64xf32>
    %cst_20 = arith.constant dense<0.000000e+00> : vector<8xf32>
    %28 = vector.multi_reduction <add>, %27, %cst_20 [1] : vector<8x64xf32> to vector<8xf32>
    %29 = vector.shape_cast %28 : vector<8xf32> to vector<8x1xf32>
    %30 = vector.broadcast %29 : vector<8x1xf32> to vector<8x64xf32>
    %31 = arith.divf %27, %30 : vector<8x64xf32>
    %32 = arith.truncf %31 : vector<8x64xf32> to vector<8x64xbf16>
    %cst_21 = arith.constant dense<0.000000e+00> : vector<8x32xf32>
    %33 = tpu.matmul %32, %14, %cst_21 {dimension_numbers = #tpu.dot_dimension_numbers<[1], [0], [0], [1], [0, 0, 1, 1], [], []>} : vector<8x64xbf16>, vector<64x32xbf16>, vector<8x32xf32> -> vector<8x32xf32>
    %c1 = arith.constant 1 : index
    %c0_22 = arith.constant 0 : index
    %c0_23 = arith.constant 0 : index
    %34 = vector.load %arg6[%c1, %c0_22, %c0_23] : memref<5x32x32xbf16, #tpu.memory_space<vmem>>, vector<1x32x32xbf16>
    %35 = vector.shape_cast %34 : vector<1x32x32xbf16> to vector<32x32xbf16>
    %36 = arith.truncf %33 : vector<8x32xf32> to vector<8x32xbf16>
    %cst_24 = arith.constant dense<0.000000e+00> : vector<8x32xf32>
    %37 = tpu.matmul %36, %35, %cst_24 {dimension_numbers = #tpu.dot_dimension_numbers<[1], [0], [0], [1], [0, 0, 1, 1], [], []>} : vector<8x32xbf16>, vector<32x32xbf16>, vector<8x32xf32> -> vector<8x32xf32>
    %38 = arith.addf %1, %37 : vector<8x32xf32>
    %c2 = arith.constant 2 : index
    %c0_25 = arith.constant 0 : index
    %c0_26 = arith.constant 0 : index
    %39 = vector.load %arg6[%c2, %c0_25, %c0_26] : memref<5x32x32xbf16, #tpu.memory_space<vmem>>, vector<1x32x32xbf16>
    %40 = vector.shape_cast %39 : vector<1x32x32xbf16> to vector<32x32xbf16>
    %41 = arith.truncf %38 : vector<8x32xf32> to vector<8x32xbf16>
    %cst_27 = arith.constant dense<0.000000e+00> : vector<8x32xf32>
    %42 = tpu.matmul %41, %40, %cst_27 {dimension_numbers = #tpu.dot_dimension_numbers<[1], [0], [0], [1], [0, 0, 1, 1], [], []>} : vector<8x32xbf16>, vector<32x32xbf16>, vector<8x32xf32> -> vector<8x32xf32>
    %43 = arith.truncf %42 : vector<8x32xf32> to vector<8x32xbf16>
    %c3 = arith.constant 3 : index
    %c0_28 = arith.constant 0 : index
    %c0_29 = arith.constant 0 : index
    %44 = vector.load %arg6[%c3, %c0_28, %c0_29] : memref<5x32x32xbf16, #tpu.memory_space<vmem>>, vector<1x32x32xbf16>
    %45 = vector.shape_cast %44 : vector<1x32x32xbf16> to vector<32x32xbf16>
    %46 = arith.truncf %38 : vector<8x32xf32> to vector<8x32xbf16>
    %cst_30 = arith.constant dense<0.000000e+00> : vector<8x32xf32>
    %47 = tpu.matmul %46, %45, %cst_30 {dimension_numbers = #tpu.dot_dimension_numbers<[1], [0], [0], [1], [0, 0, 1, 1], [], []>} : vector<8x32xbf16>, vector<32x32xbf16>, vector<8x32xf32> -> vector<8x32xf32>
    %c4 = arith.constant 4 : index
    %c0_31 = arith.constant 0 : index
    %c0_32 = arith.constant 0 : index
    %48 = vector.load %arg6[%c4, %c0_31, %c0_32] : memref<5x32x32xbf16, #tpu.memory_space<vmem>>, vector<1x32x32xbf16>
    %49 = vector.shape_cast %48 : vector<1x32x32xbf16> to vector<32x32xbf16>
    %50 = arith.truncf %47 : vector<8x32xf32> to vector<8x32xbf16>
    %cst_33 = arith.constant dense<0.000000e+00> : vector<8x32xf32>
    %51 = tpu.matmul %50, %49, %cst_33 {dimension_numbers = #tpu.dot_dimension_numbers<[1], [0], [0], [1], [0, 0, 1, 1], [], []>} : vector<8x32xbf16>, vector<32x32xbf16>, vector<8x32xf32> -> vector<8x32xf32>
    %52 = arith.truncf %51 : vector<8x32xf32> to vector<8x32xbf16>
    %cst_34 = arith.constant dense<0.000000e+00> : vector<8x64xf32>
    %53 = tpu.matmul %43, %11, %cst_34 {dimension_numbers = #tpu.dot_dimension_numbers<[1], [1], [0], [0], [0, 0, 1, 0], [], []>} : vector<8x32xbf16>, vector<64x32xbf16>, vector<8x64xf32> -> vector<8x64xf32>
    %cst_35 = arith.constant 0.176776692 : f32
    %54 = vector.broadcast %cst_35 : f32 to vector<8x64xf32>
    %55 = arith.mulf %53, %54 : vector<8x64xf32>
    %cst_36 = arith.constant dense<0xFF800000> : vector<64xf32>
    %56 = vector.multi_reduction <maximumf>, %55, %cst_36 [0] : vector<8x64xf32> to vector<64xf32>
    %57 = vector.shape_cast %56 : vector<64xf32> to vector<1x64xf32>
    %58 = vector.broadcast %57 : vector<1x64xf32> to vector<8x64xf32>
    %59 = arith.subf %55, %58 : vector<8x64xf32>
    %60 = math.exp %59 : vector<8x64xf32>
    %cst_37 = arith.constant dense<0.000000e+00> : vector<64xf32>
    %61 = vector.multi_reduction <add>, %60, %cst_37 [0] : vector<8x64xf32> to vector<64xf32>
    %62 = vector.shape_cast %61 : vector<64xf32> to vector<1x64xf32>
    %63 = vector.broadcast %62 : vector<1x64xf32> to vector<8x64xf32>
    %64 = arith.divf %60, %63 : vector<8x64xf32>
    %65 = arith.truncf %64 : vector<8x64xf32> to vector<8x64xbf16>
    %cst_38 = arith.constant dense<0.000000e+00> : vector<64x32xf32>
    %66 = tpu.matmul %65, %52, %cst_38 {dimension_numbers = #tpu.dot_dimension_numbers<[0], [0], [1], [1], [0, 1, 1, 1], [], []>} : vector<8x64xbf16>, vector<8x32xbf16>, vector<64x32xf32> -> vector<64x32xf32>
    %67 = arith.truncf %66 : vector<64x32xf32> to vector<64x32xbf16>
    %68 = arith.addf %3, %67 : vector<64x32xbf16>
    %c0_39 = arith.constant 0 : index
    %c0_40 = arith.constant 0 : index
    %c0_41 = arith.constant 0 : index
    %69 = vector.load %arg20[%c0_39, %c0_40, %c0_41] : memref<1x64x32xbf16, #tpu.memory_space<vmem>>, vector<1x64x32xbf16>
    %70 = vector.shape_cast %69 : vector<1x64x32xbf16> to vector<64x32xbf16>
    %71 = vector.shape_cast %68 : vector<64x32xbf16> to vector<1x64x32xbf16>
    tpu.vector_store %arg20[%c0_39, %c0_40, %c0_41], %71 {strides = array<i32>} : memref<1x64x32xbf16, #tpu.memory_space<vmem>>, vector<1x64x32xbf16>,
    %c0_42 = arith.constant 0 : index
    %c0_43 = arith.constant 0 : index
    %c0_44 = arith.constant 0 : index
    %72 = vector.load %arg19[%c0_42, %c0_43, %c0_44] : memref<1x8x32xf32, #tpu.memory_space<vmem>>, vector<1x8x32xf32>
    %73 = vector.shape_cast %72 : vector<1x8x32xf32> to vector<8x32xf32>
    %74 = vector.shape_cast %38 : vector<8x32xf32> to vector<1x8x32xf32>
    tpu.vector_store %arg19[%c0_42, %c0_43, %c0_44], %74 {strides = array<i32>} : memref<1x8x32xf32, #tpu.memory_space<vmem>>, vector<1x8x32xf32>,
    %75 = vector.extract_strided_slice %38 {offsets = [0, 0], sizes = [1, 32], strides = [1, 1]} : vector<8x32xf32> to vector<1x32xf32>
    %76 = arith.truncf %75 : vector<1x32xf32> to vector<1x32xbf16>
    %c0_45 = arith.constant 0 : index
    %c0_46 = arith.constant 0 : index
    %77 = vector.load %arg13[%c0_45, %c0_46] : memref<32x32xbf16, #tpu.memory_space<vmem>>, vector<32x32xbf16>
    %cst_47 = arith.constant dense<0.000000e+00> : vector<1x32xf32>
    %78 = tpu.matmul %76, %77, %cst_47 {dimension_numbers = #tpu.dot_dimension_numbers<[1], [0], [0], [1], [0, 0, 1, 1], [], []>} : vector<1x32xbf16>, vector<32x32xbf16>, vector<1x32xf32> -> vector<1x32xf32>
    %c0_48 = arith.constant 0 : index
    %c0_49 = arith.constant 0 : index
    %79 = vector.load %arg14[%c0_48, %c0_49] : memref<1x32xf32, #tpu.memory_space<vmem>>, vector<1x32xf32>
    %80 = arith.addf %78, %79 : vector<1x32xf32>
    %cst_50 = arith.constant 0.000000e+00 : f32
    %81 = vector.broadcast %cst_50 : f32 to vector<1x32xf32>
    %82 = arith.maximumf %80, %81 : vector<1x32xf32>
    %83 = arith.truncf %82 : vector<1x32xf32> to vector<1x32xbf16>
    %c0_51 = arith.constant 0 : index
    %c0_52 = arith.constant 0 : index
    %84 = vector.load %arg15[%c0_51, %c0_52] : memref<32x32xbf16, #tpu.memory_space<vmem>>, vector<32x32xbf16>
    %cst_53 = arith.constant dense<0.000000e+00> : vector<1x32xf32>
    %85 = tpu.matmul %83, %84, %cst_53 {dimension_numbers = #tpu.dot_dimension_numbers<[1], [0], [0], [1], [0, 0, 1, 1], [], []>} : vector<1x32xbf16>, vector<32x32xbf16>, vector<1x32xf32> -> vector<1x32xf32>
    %c0_54 = arith.constant 0 : index
    %c0_55 = arith.constant 0 : index
    %86 = vector.load %arg16[%c0_54, %c0_55] : memref<1x32xf32, #tpu.memory_space<vmem>>, vector<1x32xf32>
    %87 = arith.addf %85, %86 : vector<1x32xf32>
    %cst_56 = arith.constant 0.000000e+00 : f32
    %88 = vector.broadcast %cst_56 : f32 to vector<1x32xf32>
    %89 = arith.maximumf %87, %88 : vector<1x32xf32>
    %90 = arith.truncf %89 : vector<1x32xf32> to vector<1x32xbf16>
    %c0_57 = arith.constant 0 : index
    %c0_58 = arith.constant 0 : index
    %91 = vector.load %arg17[%c0_57, %c0_58] : memref<32x4xbf16, #tpu.memory_space<vmem>>, vector<32x4xbf16>
    %cst_59 = arith.constant dense<0.000000e+00> : vector<1x4xf32>
    %92 = tpu.matmul %90, %91, %cst_59 {dimension_numbers = #tpu.dot_dimension_numbers<[1], [0], [0], [1], [0, 0, 1, 1], [], []>} : vector<1x32xbf16>, vector<32x4xbf16>, vector<1x4xf32> -> vector<1x4xf32>
    %c0_60 = arith.constant 0 : index
    %c0_61 = arith.constant 0 : index
    %93 = vector.load %arg18[%c0_60, %c0_61] : memref<1x4xf32, #tpu.memory_space<vmem>>, vector<1x4xf32>
    %94 = arith.addf %92, %93 : vector<1x4xf32>
    %c0_62 = arith.constant 0 : index
    %c0_63 = arith.constant 0 : index
    %c0_64 = arith.constant 0 : index
    %95 = vector.load %arg22[%c0_62, %c0_63, %c0_64] : memref<1x1x4xf32, #tpu.memory_space<vmem>>, vector<1x1x4xf32>
    %96 = vector.shape_cast %95 : vector<1x1x4xf32> to vector<1x4xf32>
    %97 = vector.shape_cast %94 : vector<1x4xf32> to vector<1x1x4xf32>
    tpu.vector_store %arg22[%c0_62, %c0_63, %c0_64], %97 {strides = array<i32>} : memref<1x1x4xf32, #tpu.memory_space<vmem>>, vector<1x1x4xf32>,
    %98 = vector.extract_strided_slice %38 {offsets = [1, 0], sizes = [1, 32], strides = [1, 1]} : vector<8x32xf32> to vector<1x32xf32>
    %99 = arith.truncf %98 : vector<1x32xf32> to vector<1x32xbf16>
    %c0_65 = arith.constant 0 : index
    %c0_66 = arith.constant 0 : index
    %c0_67 = arith.constant 0 : index
    %100 = vector.load %arg7[%c0_65, %c0_66, %c0_67] : memref<4x32x32xbf16, #tpu.memory_space<vmem>>, vector<1x32x32xbf16>
    %101 = vector.shape_cast %100 : vector<1x32x32xbf16> to vector<32x32xbf16>
    %cst_68 = arith.constant dense<0.000000e+00> : vector<1x32xf32>
    %102 = tpu.matmul %99, %101, %cst_68 {dimension_numbers = #tpu.dot_dimension_numbers<[1], [0], [0], [1], [0, 0, 1, 1], [], []>} : vector<1x32xbf16>, vector<32x32xbf16>, vector<1x32xf32> -> vector<1x32xf32>
    %c0_69 = arith.constant 0 : index
    %c0_70 = arith.constant 0 : index
    %103 = vector.load %arg8[%c0_69, %c0_70] : memref<4x32xf32, #tpu.memory_space<vmem>>, vector<1x32xf32>
    %104 = arith.addf %102, %103 : vector<1x32xf32>
    %cst_71 = arith.constant 0.000000e+00 : f32
    %105 = vector.broadcast %cst_71 : f32 to vector<1x32xf32>
    %106 = arith.maximumf %104, %105 : vector<1x32xf32>
    %107 = arith.truncf %106 : vector<1x32xf32> to vector<1x32xbf16>
    %c0_72 = arith.constant 0 : index
    %c0_73 = arith.constant 0 : index
    %c0_74 = arith.constant 0 : index
    %108 = vector.load %arg9[%c0_72, %c0_73, %c0_74] : memref<4x32x32xbf16, #tpu.memory_space<vmem>>, vector<1x32x32xbf16>
    %109 = vector.shape_cast %108 : vector<1x32x32xbf16> to vector<32x32xbf16>
    %cst_75 = arith.constant dense<0.000000e+00> : vector<1x32xf32>
    %110 = tpu.matmul %107, %109, %cst_75 {dimension_numbers = #tpu.dot_dimension_numbers<[1], [0], [0], [1], [0, 0, 1, 1], [], []>} : vector<1x32xbf16>, vector<32x32xbf16>, vector<1x32xf32> -> vector<1x32xf32>
    %c0_76 = arith.constant 0 : index
    %c0_77 = arith.constant 0 : index
    %111 = vector.load %arg10[%c0_76, %c0_77] : memref<4x32xf32, #tpu.memory_space<vmem>>, vector<1x32xf32>
    %112 = arith.addf %110, %111 : vector<1x32xf32>
    %cst_78 = arith.constant 0.000000e+00 : f32
    %113 = vector.broadcast %cst_78 : f32 to vector<1x32xf32>
    %114 = arith.maximumf %112, %113 : vector<1x32xf32>
    %115 = arith.truncf %114 : vector<1x32xf32> to vector<1x32xbf16>
    %c0_79 = arith.constant 0 : index
    %c0_80 = arith.constant 0 : index
    %c0_81 = arith.constant 0 : index
    %116 = vector.load %arg11[%c0_79, %c0_80, %c0_81] : memref<4x32x4xbf16, #tpu.memory_space<vmem>>, vector<1x32x4xbf16>
    %117 = vector.shape_cast %116 : vector<1x32x4xbf16> to vector<32x4xbf16>
    %cst_82 = arith.constant dense<0.000000e+00> : vector<1x4xf32>
    %118 = tpu.matmul %115, %117, %cst_82 {dimension_numbers = #tpu.dot_dimension_numbers<[1], [0], [0], [1], [0, 0, 1, 1], [], []>} : vector<1x32xbf16>, vector<32x4xbf16>, vector<1x4xf32> -> vector<1x4xf32>
    %c0_83 = arith.constant 0 : index
    %c0_84 = arith.constant 0 : index
    %119 = vector.load %arg12[%c0_83, %c0_84] : memref<4x4xf32, #tpu.memory_space<vmem>>, vector<1x4xf32>
    %120 = arith.addf %118, %119 : vector<1x4xf32>
    %c0_85 = arith.constant 0 : index
    %c0_86 = arith.constant 0 : index
    %c0_87 = arith.constant 0 : index
    %121 = vector.load %arg21[%c0_85, %c0_86, %c0_87] : memref<1x4x4xf32, #tpu.memory_space<vmem>>, vector<1x1x4xf32>
    %122 = vector.shape_cast %121 : vector<1x1x4xf32> to vector<1x4xf32>
    %123 = vector.shape_cast %120 : vector<1x4xf32> to vector<1x1x4xf32>
    tpu.vector_store %arg21[%c0_85, %c0_86, %c0_87], %123 {strides = array<i32>} : memref<1x4x4xf32, #tpu.memory_space<vmem>>, vector<1x1x4xf32>,
    %124 = vector.extract_strided_slice %38 {offsets = [2, 0], sizes = [1, 32], strides = [1, 1]} : vector<8x32xf32> to vector<1x32xf32>
    %125 = arith.truncf %124 : vector<1x32xf32> to vector<1x32xbf16>
    %c1_88 = arith.constant 1 : index
    %c0_89 = arith.constant 0 : index
    %c0_90 = arith.constant 0 : index
    %126 = vector.load %arg7[%c1_88, %c0_89, %c0_90] : memref<4x32x32xbf16, #tpu.memory_space<vmem>>, vector<1x32x32xbf16>
    %127 = vector.shape_cast %126 : vector<1x32x32xbf16> to vector<32x32xbf16>
    %cst_91 = arith.constant dense<0.000000e+00> : vector<1x32xf32>
    %128 = tpu.matmul %125, %127, %cst_91 {dimension_numbers = #tpu.dot_dimension_numbers<[1], [0], [0], [1], [0, 0, 1, 1], [], []>} : vector<1x32xbf16>, vector<32x32xbf16>, vector<1x32xf32> -> vector<1x32xf32>
    %c1_92 = arith.constant 1 : index
    %c0_93 = arith.constant 0 : index
    %129 = vector.load %arg8[%c1_92, %c0_93] : memref<4x32xf32, #tpu.memory_space<vmem>>, vector<1x32xf32>
    %130 = arith.addf %128, %129 : vector<1x32xf32>
    %cst_94 = arith.constant 0.000000e+00 : f32
    %131 = vector.broadcast %cst_94 : f32 to vector<1x32xf32>
    %132 = arith.maximumf %130, %131 : vector<1x32xf32>
    %133 = arith.truncf %132 : vector<1x32xf32> to vector<1x32xbf16>
    %c1_95 = arith.constant 1 : index
    %c0_96 = arith.constant 0 : index
    %c0_97 = arith.constant 0 : index
    %134 = vector.load %arg9[%c1_95, %c0_96, %c0_97] : memref<4x32x32xbf16, #tpu.memory_space<vmem>>, vector<1x32x32xbf16>
    %135 = vector.shape_cast %134 : vector<1x32x32xbf16> to vector<32x32xbf16>
    %cst_98 = arith.constant dense<0.000000e+00> : vector<1x32xf32>
    %136 = tpu.matmul %133, %135, %cst_98 {dimension_numbers = #tpu.dot_dimension_numbers<[1], [0], [0], [1], [0, 0, 1, 1], [], []>} : vector<1x32xbf16>, vector<32x32xbf16>, vector<1x32xf32> -> vector<1x32xf32>
    %c1_99 = arith.constant 1 : index
    %c0_100 = arith.constant 0 : index
    %137 = vector.load %arg10[%c1_99, %c0_100] : memref<4x32xf32, #tpu.memory_space<vmem>>, vector<1x32xf32>
    %138 = arith.addf %136, %137 : vector<1x32xf32>
    %cst_101 = arith.constant 0.000000e+00 : f32
    %139 = vector.broadcast %cst_101 : f32 to vector<1x32xf32>
    %140 = arith.maximumf %138, %139 : vector<1x32xf32>
    %141 = arith.truncf %140 : vector<1x32xf32> to vector<1x32xbf16>
    %c1_102 = arith.constant 1 : index
    %c0_103 = arith.constant 0 : index
    %c0_104 = arith.constant 0 : index
    %142 = vector.load %arg11[%c1_102, %c0_103, %c0_104] : memref<4x32x4xbf16, #tpu.memory_space<vmem>>, vector<1x32x4xbf16>
    %143 = vector.shape_cast %142 : vector<1x32x4xbf16> to vector<32x4xbf16>
    %cst_105 = arith.constant dense<0.000000e+00> : vector<1x4xf32>
    %144 = tpu.matmul %141, %143, %cst_105 {dimension_numbers = #tpu.dot_dimension_numbers<[1], [0], [0], [1], [0, 0, 1, 1], [], []>} : vector<1x32xbf16>, vector<32x4xbf16>, vector<1x4xf32> -> vector<1x4xf32>
    %c1_106 = arith.constant 1 : index
    %c0_107 = arith.constant 0 : index
    %145 = vector.load %arg12[%c1_106, %c0_107] : memref<4x4xf32, #tpu.memory_space<vmem>>, vector<1x4xf32>
    %146 = arith.addf %144, %145 : vector<1x4xf32>
    %c0_108 = arith.constant 0 : index
    %c1_109 = arith.constant 1 : index
    %c0_110 = arith.constant 0 : index
    %147 = vector.load %arg21[%c0_108, %c1_109, %c0_110] : memref<1x4x4xf32, #tpu.memory_space<vmem>>, vector<1x1x4xf32>
    %148 = vector.shape_cast %147 : vector<1x1x4xf32> to vector<1x4xf32>
    %149 = vector.shape_cast %146 : vector<1x4xf32> to vector<1x1x4xf32>
    tpu.vector_store %arg21[%c0_108, %c1_109, %c0_110], %149 {strides = array<i32>} : memref<1x4x4xf32, #tpu.memory_space<vmem>>, vector<1x1x4xf32>,
    %150 = vector.extract_strided_slice %38 {offsets = [3, 0], sizes = [1, 32], strides = [1, 1]} : vector<8x32xf32> to vector<1x32xf32>
    %151 = arith.truncf %150 : vector<1x32xf32> to vector<1x32xbf16>
    %c2_111 = arith.constant 2 : index
    %c0_112 = arith.constant 0 : index
    %c0_113 = arith.constant 0 : index
    %152 = vector.load %arg7[%c2_111, %c0_112, %c0_113] : memref<4x32x32xbf16, #tpu.memory_space<vmem>>, vector<1x32x32xbf16>
    %153 = vector.shape_cast %152 : vector<1x32x32xbf16> to vector<32x32xbf16>
    %cst_114 = arith.constant dense<0.000000e+00> : vector<1x32xf32>
    %154 = tpu.matmul %151, %153, %cst_114 {dimension_numbers = #tpu.dot_dimension_numbers<[1], [0], [0], [1], [0, 0, 1, 1], [], []>} : vector<1x32xbf16>, vector<32x32xbf16>, vector<1x32xf32> -> vector<1x32xf32>
    %c2_115 = arith.constant 2 : index
    %c0_116 = arith.constant 0 : index
    %155 = vector.load %arg8[%c2_115, %c0_116] : memref<4x32xf32, #tpu.memory_space<vmem>>, vector<1x32xf32>
    %156 = arith.addf %154, %155 : vector<1x32xf32>
    %cst_117 = arith.constant 0.000000e+00 : f32
    %157 = vector.broadcast %cst_117 : f32 to vector<1x32xf32>
    %158 = arith.maximumf %156, %157 : vector<1x32xf32>
    %159 = arith.truncf %158 : vector<1x32xf32> to vector<1x32xbf16>
    %c2_118 = arith.constant 2 : index
    %c0_119 = arith.constant 0 : index
    %c0_120 = arith.constant 0 : index
    %160 = vector.load %arg9[%c2_118, %c0_119, %c0_120] : memref<4x32x32xbf16, #tpu.memory_space<vmem>>, vector<1x32x32xbf16>
    %161 = vector.shape_cast %160 : vector<1x32x32xbf16> to vector<32x32xbf16>
    %cst_121 = arith.constant dense<0.000000e+00> : vector<1x32xf32>
    %162 = tpu.matmul %159, %161, %cst_121 {dimension_numbers = #tpu.dot_dimension_numbers<[1], [0], [0], [1], [0, 0, 1, 1], [], []>} : vector<1x32xbf16>, vector<32x32xbf16>, vector<1x32xf32> -> vector<1x32xf32>
    %c2_122 = arith.constant 2 : index
    %c0_123 = arith.constant 0 : index
    %163 = vector.load %arg10[%c2_122, %c0_123] : memref<4x32xf32, #tpu.memory_space<vmem>>, vector<1x32xf32>
    %164 = arith.addf %162, %163 : vector<1x32xf32>
    %cst_124 = arith.constant 0.000000e+00 : f32
    %165 = vector.broadcast %cst_124 : f32 to vector<1x32xf32>
    %166 = arith.maximumf %164, %165 : vector<1x32xf32>
    %167 = arith.truncf %166 : vector<1x32xf32> to vector<1x32xbf16>
    %c2_125 = arith.constant 2 : index
    %c0_126 = arith.constant 0 : index
    %c0_127 = arith.constant 0 : index
    %168 = vector.load %arg11[%c2_125, %c0_126, %c0_127] : memref<4x32x4xbf16, #tpu.memory_space<vmem>>, vector<1x32x4xbf16>
    %169 = vector.shape_cast %168 : vector<1x32x4xbf16> to vector<32x4xbf16>
    %cst_128 = arith.constant dense<0.000000e+00> : vector<1x4xf32>
    %170 = tpu.matmul %167, %169, %cst_128 {dimension_numbers = #tpu.dot_dimension_numbers<[1], [0], [0], [1], [0, 0, 1, 1], [], []>} : vector<1x32xbf16>, vector<32x4xbf16>, vector<1x4xf32> -> vector<1x4xf32>
    %c2_129 = arith.constant 2 : index
    %c0_130 = arith.constant 0 : index
    %171 = vector.load %arg12[%c2_129, %c0_130] : memref<4x4xf32, #tpu.memory_space<vmem>>, vector<1x4xf32>
    %172 = arith.addf %170, %171 : vector<1x4xf32>
    %c0_131 = arith.constant 0 : index
    %c2_132 = arith.constant 2 : index
    %c0_133 = arith.constant 0 : index
    %173 = vector.load %arg21[%c0_131, %c2_132, %c0_133] : memref<1x4x4xf32, #tpu.memory_space<vmem>>, vector<1x1x4xf32>
    %174 = vector.shape_cast %173 : vector<1x1x4xf32> to vector<1x4xf32>
    %175 = vector.shape_cast %172 : vector<1x4xf32> to vector<1x1x4xf32>
    tpu.vector_store %arg21[%c0_131, %c2_132, %c0_133], %175 {strides = array<i32>} : memref<1x4x4xf32, #tpu.memory_space<vmem>>, vector<1x1x4xf32>,
    %176 = vector.extract_strided_slice %38 {offsets = [4, 0], sizes = [1, 32], strides = [1, 1]} : vector<8x32xf32> to vector<1x32xf32>
    %177 = arith.truncf %176 : vector<1x32xf32> to vector<1x32xbf16>
    %c3_134 = arith.constant 3 : index
    %c0_135 = arith.constant 0 : index
    %c0_136 = arith.constant 0 : index
    %178 = vector.load %arg7[%c3_134, %c0_135, %c0_136] : memref<4x32x32xbf16, #tpu.memory_space<vmem>>, vector<1x32x32xbf16>
    %179 = vector.shape_cast %178 : vector<1x32x32xbf16> to vector<32x32xbf16>
    %cst_137 = arith.constant dense<0.000000e+00> : vector<1x32xf32>
    %180 = tpu.matmul %177, %179, %cst_137 {dimension_numbers = #tpu.dot_dimension_numbers<[1], [0], [0], [1], [0, 0, 1, 1], [], []>} : vector<1x32xbf16>, vector<32x32xbf16>, vector<1x32xf32> -> vector<1x32xf32>
    %c3_138 = arith.constant 3 : index
    %c0_139 = arith.constant 0 : index
    %181 = vector.load %arg8[%c3_138, %c0_139] : memref<4x32xf32, #tpu.memory_space<vmem>>, vector<1x32xf32>
    %182 = arith.addf %180, %181 : vector<1x32xf32>
    %cst_140 = arith.constant 0.000000e+00 : f32
    %183 = vector.broadcast %cst_140 : f32 to vector<1x32xf32>
    %184 = arith.maximumf %182, %183 : vector<1x32xf32>
    %185 = arith.truncf %184 : vector<1x32xf32> to vector<1x32xbf16>
    %c3_141 = arith.constant 3 : index
    %c0_142 = arith.constant 0 : index
    %c0_143 = arith.constant 0 : index
    %186 = vector.load %arg9[%c3_141, %c0_142, %c0_143] : memref<4x32x32xbf16, #tpu.memory_space<vmem>>, vector<1x32x32xbf16>
    %187 = vector.shape_cast %186 : vector<1x32x32xbf16> to vector<32x32xbf16>
    %cst_144 = arith.constant dense<0.000000e+00> : vector<1x32xf32>
    %188 = tpu.matmul %185, %187, %cst_144 {dimension_numbers = #tpu.dot_dimension_numbers<[1], [0], [0], [1], [0, 0, 1, 1], [], []>} : vector<1x32xbf16>, vector<32x32xbf16>, vector<1x32xf32> -> vector<1x32xf32>
    %c3_145 = arith.constant 3 : index
    %c0_146 = arith.constant 0 : index
    %189 = vector.load %arg10[%c3_145, %c0_146] : memref<4x32xf32, #tpu.memory_space<vmem>>, vector<1x32xf32>
    %190 = arith.addf %188, %189 : vector<1x32xf32>
    %cst_147 = arith.constant 0.000000e+00 : f32
    %191 = vector.broadcast %cst_147 : f32 to vector<1x32xf32>
    %192 = arith.maximumf %190, %191 : vector<1x32xf32>
    %193 = arith.truncf %192 : vector<1x32xf32> to vector<1x32xbf16>
    %c3_148 = arith.constant 3 : index
    %c0_149 = arith.constant 0 : index
    %c0_150 = arith.constant 0 : index
    %194 = vector.load %arg11[%c3_148, %c0_149, %c0_150] : memref<4x32x4xbf16, #tpu.memory_space<vmem>>, vector<1x32x4xbf16>
    %195 = vector.shape_cast %194 : vector<1x32x4xbf16> to vector<32x4xbf16>
    %cst_151 = arith.constant dense<0.000000e+00> : vector<1x4xf32>
    %196 = tpu.matmul %193, %195, %cst_151 {dimension_numbers = #tpu.dot_dimension_numbers<[1], [0], [0], [1], [0, 0, 1, 1], [], []>} : vector<1x32xbf16>, vector<32x4xbf16>, vector<1x4xf32> -> vector<1x4xf32>
    %c3_152 = arith.constant 3 : index
    %c0_153 = arith.constant 0 : index
    %197 = vector.load %arg12[%c3_152, %c0_153] : memref<4x4xf32, #tpu.memory_space<vmem>>, vector<1x4xf32>
    %198 = arith.addf %196, %197 : vector<1x4xf32>
    %c0_154 = arith.constant 0 : index
    %c3_155 = arith.constant 3 : index
    %c0_156 = arith.constant 0 : index
    %199 = vector.load %arg21[%c0_154, %c3_155, %c0_156] : memref<1x4x4xf32, #tpu.memory_space<vmem>>, vector<1x1x4xf32>
    %200 = vector.shape_cast %199 : vector<1x1x4xf32> to vector<1x4xf32>
    %201 = vector.shape_cast %198 : vector<1x4xf32> to vector<1x1x4xf32>
    tpu.vector_store %arg21[%c0_154, %c3_155, %c0_156], %201 {strides = array<i32>} : memref<1x4x4xf32, #tpu.memory_space<vmem>>, vector<1x1x4xf32>,
    return
  }
  func.func @transform_0(%arg0: i32) -> (i32, i32, i32) {
    %c0_i32 = arith.constant 0 : i32
    %c0_i32_0 = arith.constant 0 : i32
    %c0_i32_1 = arith.constant 0 : i32
    return %arg0, %c0_i32, %c0_i32_0 : i32, i32, i32
  }
  func.func @transform_1(%arg0: i32) -> (i32, i32, i32) {
    %c0_i32 = arith.constant 0 : i32
    %c0_i32_0 = arith.constant 0 : i32
    %c0_i32_1 = arith.constant 0 : i32
    return %arg0, %c0_i32, %c0_i32_0 : i32, i32, i32
  }
  func.func @transform_2(%arg0: i32) -> (i32, i32, i32) {
    %c0_i32 = arith.constant 0 : i32
    %c0_i32_0 = arith.constant 0 : i32
    %c0_i32_1 = arith.constant 0 : i32
    %c0_i32_2 = arith.constant 0 : i32
    return %c0_i32, %c0_i32_0, %c0_i32_1 : i32, i32, i32
  }
  func.func @transform_3(%arg0: i32) -> (i32, i32) {
    %c0_i32 = arith.constant 0 : i32
    %c0_i32_0 = arith.constant 0 : i32
    %c0_i32_1 = arith.constant 0 : i32
    return %c0_i32, %c0_i32_0 : i32, i32
  }
  func.func @transform_4(%arg0: i32) -> (i32, i32) {
    %c0_i32 = arith.constant 0 : i32
    %c0_i32_0 = arith.constant 0 : i32
    %c0_i32_1 = arith.constant 0 : i32
    return %c0_i32, %c0_i32_0 : i32, i32
  }
  func.func @transform_5(%arg0: i32) -> (i32, i32, i32) {
    %c0_i32 = arith.constant 0 : i32
    %c0_i32_0 = arith.constant 0 : i32
    %c0_i32_1 = arith.constant 0 : i32
    %c0_i32_2 = arith.constant 0 : i32
    return %c0_i32, %c0_i32_0, %c0_i32_1 : i32, i32, i32
  }
  func.func @transform_6(%arg0: i32) -> (i32, i32, i32) {
    %c0_i32 = arith.constant 0 : i32
    %c0_i32_0 = arith.constant 0 : i32
    %c0_i32_1 = arith.constant 0 : i32
    %c0_i32_2 = arith.constant 0 : i32
    return %c0_i32, %c0_i32_0, %c0_i32_1 : i32, i32, i32
  }
  func.func @transform_7(%arg0: i32) -> (i32, i32) {
    %c0_i32 = arith.constant 0 : i32
    %c0_i32_0 = arith.constant 0 : i32
    %c0_i32_1 = arith.constant 0 : i32
    return %c0_i32, %c0_i32_0 : i32, i32
  }
  func.func @transform_8(%arg0: i32) -> (i32, i32, i32) {
    %c0_i32 = arith.constant 0 : i32
    %c0_i32_0 = arith.constant 0 : i32
    %c0_i32_1 = arith.constant 0 : i32
    %c0_i32_2 = arith.constant 0 : i32
    return %c0_i32, %c0_i32_0, %c0_i32_1 : i32, i32, i32
  }
  func.func @transform_9(%arg0: i32) -> (i32, i32) {
    %c0_i32 = arith.constant 0 : i32
    %c0_i32_0 = arith.constant 0 : i32
    %c0_i32_1 = arith.constant 0 : i32
    return %c0_i32, %c0_i32_0 : i32, i32
  }
  func.func @transform_10(%arg0: i32) -> (i32, i32, i32) {
    %c0_i32 = arith.constant 0 : i32
    %c0_i32_0 = arith.constant 0 : i32
    %c0_i32_1 = arith.constant 0 : i32
    %c0_i32_2 = arith.constant 0 : i32
    return %c0_i32, %c0_i32_0, %c0_i32_1 : i32, i32, i32
  }
  func.func @transform_11(%arg0: i32) -> (i32, i32) {
    %c0_i32 = arith.constant 0 : i32
    %c0_i32_0 = arith.constant 0 : i32
    %c0_i32_1 = arith.constant 0 : i32
    return %c0_i32, %c0_i32_0 : i32, i32
  }
  func.func @transform_12(%arg0: i32) -> (i32, i32) {
    %c0_i32 = arith.constant 0 : i32
    %c0_i32_0 = arith.constant 0 : i32
    %c0_i32_1 = arith.constant 0 : i32
    return %c0_i32, %c0_i32_0 : i32, i32
  }
  func.func @transform_13(%arg0: i32) -> (i32, i32) {
    %c0_i32 = arith.constant 0 : i32
    %c0_i32_0 = arith.constant 0 : i32
    %c0_i32_1 = arith.constant 0 : i32
    return %c0_i32, %c0_i32_0 : i32, i32
  }
  func.func @transform_14(%arg0: i32) -> (i32, i32) {
    %c0_i32 = arith.constant 0 : i32
    %c0_i32_0 = arith.constant 0 : i32
    %c0_i32_1 = arith.constant 0 : i32
    return %c0_i32, %c0_i32_0 : i32, i32
  }
  func.func @transform_15(%arg0: i32) -> (i32, i32) {
    %c0_i32 = arith.constant 0 : i32
    %c0_i32_0 = arith.constant 0 : i32
    %c0_i32_1 = arith.constant 0 : i32
    return %c0_i32, %c0_i32_0 : i32, i32
  }
  func.func @transform_16(%arg0: i32) -> (i32, i32) {
    %c0_i32 = arith.constant 0 : i32
    %c0_i32_0 = arith.constant 0 : i32
    %c0_i32_1 = arith.constant 0 : i32
    return %c0_i32, %c0_i32_0 : i32, i32
  }
  func.func @transform_17(%arg0: i32) -> (i32, i32) {
    %c0_i32 = arith.constant 0 : i32
    %c0_i32_0 = arith.constant 0 : i32
    %c0_i32_1 = arith.constant 0 : i32
    return %c0_i32, %c0_i32_0 : i32, i32
  }
  func.func @transform_18(%arg0: i32) -> (i32, i32, i32) {
    %c0_i32 = arith.constant 0 : i32
    %c0_i32_0 = arith.constant 0 : i32
    %c0_i32_1 = arith.constant 0 : i32
    return %arg0, %c0_i32, %c0_i32_0 : i32, i32, i32
  }
  func.func @transform_19(%arg0: i32) -> (i32, i32, i32) {
    %c0_i32 = arith.constant 0 : i32
    %c0_i32_0 = arith.constant 0 : i32
    %c0_i32_1 = arith.constant 0 : i32
    return %arg0, %c0_i32, %c0_i32_0 : i32, i32, i32
  }
  func.func @transform_20(%arg0: i32) -> (i32, i32, i32) {
    %c0_i32 = arith.constant 0 : i32
    %c0_i32_0 = arith.constant 0 : i32
    %c0_i32_1 = arith.constant 0 : i32
    return %arg0, %c0_i32, %c0_i32_0 : i32, i32, i32
  }
  func.func @transform_21(%arg0: i32) -> (i32, i32, i32) {
    %c0_i32 = arith.constant 0 : i32
    %c0_i32_0 = arith.constant 0 : i32
    %c0_i32_1 = arith.constant 0 : i32
    return %arg0, %c0_i32, %c0_i32_0 : i32, i32, i32
  }
}

</mosaic_0001>

<llo_original>
// kernel: tpu_custom_call.1
$region0: #{tpu_custom_call.1}
  #allocation0 [shape = 'u32[]', space=smem, size = 0x4, offset = 0x4, fixed_abs, tag = 'smem constant byte address 0x4 - core index']
  #allocation1 [shape = 'u32[72,128]{1,0:T(1,128)}', space=vmem, size = 0x9000, scoped, tag = 'internal scratch']
  %s0 = inlined_call_operand.vmem [shape: f32[2,8,32], index: 0, kind: input, shape index: {}]
  %s1 = inlined_call_operand.vmem [shape: bf16[2,64,32], index: 1, kind: input, shape index: {}]
  %s2 = inlined_call_operand.vmem [shape: bf16[1,64,32], index: 2, kind: input, shape index: {}]
  %s3 = inlined_call_operand.vmem [shape: bf16[32,64], index: 3, kind: input, shape index: {}]
  %s4 = inlined_call_operand.hbm [shape: bf16[32,32], index: 4, kind: input, shape index: {}]
  %s5 = inlined_call_operand.vmem [shape: bf16[5,32,32], index: 5, kind: input, shape index: {}]
  %s6 = inlined_call_operand.vmem [shape: bf16[4,32,32], index: 6, kind: input, shape index: {}]
  %s7 = inlined_call_operand.hbm [shape: f32[4,32], index: 7, kind: input, shape index: {}]
  %s8 = inlined_call_operand.hbm [shape: bf16[4,32,32], index: 8, kind: input, shape index: {}]
  %s9 = inlined_call_operand.vmem [shape: f32[4,32], index: 9, kind: input, shape index: {}]
  %s10 = inlined_call_operand.vmem [shape: bf16[4,32,4], index: 10, kind: input, shape index: {}]
  %s11 = inlined_call_operand.hbm [shape: f32[4,4], index: 11, kind: input, shape index: {}]
  %s12 = inlined_call_operand.hbm [shape: bf16[32,32], index: 12, kind: input, shape index: {}]
  %s13 = inlined_call_operand.vmem [shape: f32[1,32], index: 13, kind: input, shape index: {}]
  %s14 = inlined_call_operand.hbm [shape: bf16[32,32], index: 14, kind: input, shape index: {}]
  %s15 = inlined_call_operand.vmem [shape: f32[1,32], index: 15, kind: input, shape index: {}]
  %s16 = inlined_call_operand.vmem [shape: bf16[32,4], index: 16, kind: input, shape index: {}]
  %s17 = inlined_call_operand.vmem [shape: f32[1,4], index: 17, kind: input, shape index: {}]
  %s18 = inlined_call_operand.hbm [shape: f32[2,8,32], index: 18, kind: output, shape index: {0}]
  %s19 = inlined_call_operand.vmem [shape: bf16[2,64,32], index: 19, kind: output, shape index: {1}]
  %s20 = inlined_call_operand.hbm [shape: f32[2,4,4], index: 20, kind: output, shape index: {2}]
  %s21 = inlined_call_operand.hbm [shape: f32[2,1,4], index: 21, kind: output, shape index: {3}]
  %22 = xla_tuple %s18, %s19, %s20, %s21
  %s23 = sld [smem:[#allocation0]]
  $region153: #{tpu_custom_call.1} parent=0
    _
  %s25 = ssub.s32 1, %s23
  %s26 = scalar_select 0, %s25, %s23
  $region1: #{tpu_custom_call.1} parent=0
    #allocation2 [shape = 'u8[8192]{0}', space=vmem, size = 0x2000, scoped, tag = 'input window, operand 4, single buffered']
    #allocation3 [shape = 's32[2]{0}', space=sflag, size = 0x8, scoped, tag = 'scoped memory for tpu_custom_call.1']
    #allocation4 [shape = 's32[2]{0}', space=sflag, size = 0x8, scoped, tag = 'scoped memory for tpu_custom_call.1']
    #allocation5 [shape = 'u8[2048]{0}', space=vmem, size = 0x800, scoped, tag = 'input window, operand 7, single buffered']
    #allocation6 [shape = 's32[1]{0}', space=sflag, size = 0x4, scoped, tag = 'scoped memory for tpu_custom_call.1']
    #allocation7 [shape = 'u8[32768]{0}', space=vmem, size = 0x8000, scoped, tag = 'input window, operand 8, single buffered']
    #allocation8 [shape = 'u8[2048]{0}', space=vmem, size = 0x800, scoped, tag = 'input window, operand 11, single buffered']
    #allocation9 [shape = 's32[1]{0}', space=sflag, size = 0x4, scoped, tag = 'scoped memory for tpu_custom_call.1']
    #allocation10 [shape = 'u8[8192]{0}', space=vmem, size = 0x2000, scoped, tag = 'input window, operand 12, single buffered']
    #allocation11 [shape = 'u8[8192]{0}', space=vmem, size = 0x2000, scoped, tag = 'input window, operand 14, single buffered']
    #allocation12 [shape = 's32[1]{0}', space=sflag, size = 0x4, scoped, tag = 'scoped memory for tpu_custom_call.1']
    #allocation13 [shape = 'u8[8192]{0}', space=vmem, size = 0x2000, scoped, tag = 'output window, operand 0']
    #allocation14 [shape = 'u8[4096]{0}', space=vmem, size = 0x1000, scoped, tag = 'output window, operand 2']
    #allocation15 [shape = 's32[2]{0}', space=sflag, size = 0x8, scoped, tag = 'scoped memory for tpu_custom_call.1']
    #allocation16 [shape = 'u8[1024]{0}', space=vmem, size = 0x400, scoped, tag = 'output window, operand 3']
    %27 = vsyncpa [#allocation3], 0
    %28 = vsyncpa [#allocation6], 0
    %29 = vsyncpa [#allocation9], 0
    %30 = vsyncpa [#allocation12], 0
    %31 = vsyncpa [#allocation4], 0
    %s32 = scalar_lea.sflag [#allocation4], 1
    %33 = vsyncpa %s32, 0
    %34 = vsyncpa [#allocation15], 0
    %s35 = scalar_lea.sflag [#allocation15], 1
    %36 = vsyncpa %s35, 0
    loop: start=0, step=1, limit=4
    $region2: #{tpu_custom_call.1} parent=1 // loop_pre_header
      _
    $region3: #{tpu_custom_call.1} parent=1 // loop_header
      %s38 = sphi 0, %s42
      %p39 = scmp.ge.s32.totalorder %s38, 4
      %s48 = sphi 0, %s50
      %s51 = sphi 0, %s48
      %s52 = sphi 0, %s51
      %s68 = sphi 0, %s52
      %s74 = sphi 0, %s76
      %s77 = sphi 0, %s74
      %s78 = sphi 0, %s77
      %s94 = sphi 0, %s78
      %s98 = sphi 0, %s98
      %s100 = sphi 0, %s98
      %s101 = sphi 0, %s100
      %s115 = sphi 0, %s101
      %s119 = sphi 0, %s119
      %s121 = sphi 0, %s119
      %s122 = sphi 0, %s121
      %s136 = sphi 0, %s122
      %s140 = sphi 0, %s140
      %s142 = sphi 0, %s140
      %s143 = sphi 0, %s142
      %s157 = sphi 0, %s143
      %s161 = sphi 0, %s161
      %s163 = sphi 0, %s161
      %s164 = sphi 0, %s163
      %s178 = sphi 0, %s164
      %s182 = sphi 0, %s182
      %s184 = sphi 0, %s182
      %s185 = sphi 0, %s184
      %s199 = sphi 0, %s185
      %s203 = sphi 0, %s203
      %s205 = sphi 0, %s203
      %s206 = sphi 0, %s205
      %s220 = sphi 0, %s206
      %s224 = sphi 0, %s224
      %s226 = sphi 0, %s224
      %s227 = sphi 0, %s226
      %s241 = sphi 0, %s227
      %s245 = sphi 0, %s245
      %s247 = sphi 0, %s245
      %s248 = sphi 0, %s247
      %s262 = sphi 0, %s248
      %s266 = sphi 0, %s266
      %s268 = sphi 0, %s266
      %s269 = sphi 0, %s268
      %s283 = sphi 0, %s269
      %s287 = sphi 0, %s287
      %s289 = sphi 0, %s287
      %s290 = sphi 0, %s289
      %s304 = sphi 0, %s290
      %s308 = sphi 0, %s308
      %s310 = sphi 0, %s308
      %s311 = sphi 0, %s310
      %s325 = sphi 0, %s311
      %s329 = sphi 0, %s329
      %s331 = sphi 0, %s329
      %s332 = sphi 0, %s331
      %s346 = sphi 0, %s332
      %s350 = sphi 0, %s350
      %s352 = sphi 0, %s350
      %s353 = sphi 0, %s352
      %s367 = sphi 0, %s353
      %s371 = sphi 0, %s371
      %s373 = sphi 0, %s371
      %s374 = sphi 0, %s373
      %s388 = sphi 0, %s374
      %s392 = sphi 0, %s392
      %s394 = sphi 0, %s392
      %s395 = sphi 0, %s394
      %s409 = sphi 0, %s395
      %s413 = sphi 0, %s413
      %s415 = sphi 0, %s413
      %s416 = sphi 0, %s415
      %s430 = sphi 0, %s416
      %s436 = sphi 0, %s438
      %s439 = sphi 0, %s436
      %s440 = sphi 0, %s439
      %s456 = sphi 0, %s440
      %s462 = sphi 0, %s464
      %s465 = sphi 0, %s462
      %s466 = sphi 0, %s465
      %s482 = sphi 0, %s466
      %s488 = sphi 0, %s490
      %s491 = sphi 0, %s488
      %s492 = sphi 0, %s491
      %s508 = sphi 0, %s492
      %s514 = sphi 0, %s516
      %s517 = sphi 0, %s514
      %s518 = sphi 0, %s517
      %s534 = sphi 0, %s518
    $region4: #{tpu_custom_call.1} parent=1 // loop_header_branch
      %41 = sbr.rel (%p39) target = $region8
    $region5: #{tpu_custom_call.1} parent=1 // loop_body
      %s43 = ssub.s32 %s38, 1
      %s44 = ssub.s32 %s38, 2
      %s45 = sadd.s32 %s38, 1
      %s46 = ssub.s32 %s38, %s45
      %p47 = scmp.eq.s32.totalorder %s46, 0
      %s49 = sadd.s32 %s48, 1
      %s50 = scalar_select %p47, %s48, %s49
      %p53 = pneg %p47
      %p54 = scmp.eq.s32.totalorder %s38, 1
      %p55 = por %p53, %p54
      %p56 = scmp.ne.s32.totalorder %s48, %s51
      %p57 = scmp.eq.s32.totalorder %s38, 0
      %p58 = por %p56, %p57
      %p59 = scmp.ne.s32.totalorder %s48, %s51
      %p60 = scmp.eq.s32.totalorder %s43, 1
      %p61 = por %p59, %p60
      %p62 = scmp.ne.s32.totalorder %s51, %s52
      %p63 = scmp.eq.s32.totalorder %s43, 0
      %p64 = por %p62, %p63
      %p65 = scmp.ne.s32.totalorder %s51, %s52
      %p66 = scmp.eq.s32.totalorder %s44, 1
      %p67 = por %p65, %p66
      %p69 = scmp.ne.s32.totalorder %s52, %s68
      %p70 = scmp.eq.s32.totalorder %s44, 0
      %p71 = por %p69, %p70
      %s72 = ssub.s32 %s38, %s45
      %p73 = scmp.eq.s32.totalorder %s72, 0
      %s75 = sadd.s32 %s74, 1
      %s76 = scalar_select %p73, %s74, %s75
      %p79 = pneg %p73
      %p80 = scmp.eq.s32.totalorder %s38, 1
      %p81 = por %p79, %p80
      %p82 = scmp.ne.s32.totalorder %s74, %s77
      %p83 = scmp.eq.s32.totalorder %s38, 0
      %p84 = por %p82, %p83
      %p85 = scmp.ne.s32.totalorder %s74, %s77
      %p86 = scmp.eq.s32.totalorder %s43, 1
      %p87 = por %p85, %p86
      %p88 = scmp.ne.s32.totalorder %s77, %s78
      %p89 = scmp.eq.s32.totalorder %s43, 0
      %p90 = por %p88, %p89
      %p91 = scmp.ne.s32.totalorder %s77, %s78
      %p92 = scmp.eq.s32.totalorder %s44, 1
      %p93 = por %p91, %p92
      %p95 = scmp.ne.s32.totalorder %s78, %s94
      %p96 = scmp.eq.s32.totalorder %s44, 0
      %p97 = por %p95, %p96
      %s99 = sadd.s32 %s98, 1
      %p102 = scmp.eq.s32.totalorder %s38, 1
      %p103 = scmp.ne.s32.totalorder %s98, %s100
      %p104 = scmp.eq.s32.totalorder %s38, 0
      %p105 = por %p103, %p104
      %p106 = scmp.ne.s32.totalorder %s98, %s100
      %p107 = scmp.eq.s32.totalorder %s43, 1
      %p108 = por %p106, %p107
      %p109 = scmp.ne.s32.totalorder %s100, %s101
      %p110 = scmp.eq.s32.totalorder %s43, 0
      %p111 = por %p109, %p110
      %p112 = scmp.ne.s32.totalorder %s100, %s101
      %p113 = scmp.eq.s32.totalorder %s44, 1
      %p114 = por %p112, %p113
      %p116 = scmp.ne.s32.totalorder %s101, %s115
      %p117 = scmp.eq.s32.totalorder %s44, 0
      %p118 = por %p116, %p117
      %s120 = sadd.s32 %s119, 1
      %p123 = scmp.eq.s32.totalorder %s38, 1
      %p124 = scmp.ne.s32.totalorder %s119, %s121
      %p125 = scmp.eq.s32.totalorder %s38, 0
      %p126 = por %p124, %p125
      %p127 = scmp.ne.s32.totalorder %s119, %s121
      %p128 = scmp.eq.s32.totalorder %s43, 1
      %p129 = por %p127, %p128
      %p130 = scmp.ne.s32.totalorder %s121, %s122
      %p131 = scmp.eq.s32.totalorder %s43, 0
      %p132 = por %p130, %p131
      %p133 = scmp.ne.s32.totalorder %s121, %s122
      %p134 = scmp.eq.s32.totalorder %s44, 1
      %p135 = por %p133, %p134
      %p137 = scmp.ne.s32.totalorder %s122, %s136
      %p138 = scmp.eq.s32.totalorder %s44, 0
      %p139 = por %p137, %p138
      %s141 = sadd.s32 %s140, 1
      %p144 = scmp.eq.s32.totalorder %s38, 1
      %p145 = scmp.ne.s32.totalorder %s140, %s142
      %p146 = scmp.eq.s32.totalorder %s38, 0
      %p147 = por %p145, %p146
      %p148 = scmp.ne.s32.totalorder %s140, %s142
      %p149 = scmp.eq.s32.totalorder %s43, 1
      %p150 = por %p148, %p149
      %p151 = scmp.ne.s32.totalorder %s142, %s143
      %p152 = scmp.eq.s32.totalorder %s43, 0
      %p153 = por %p151, %p152
      %p154 = scmp.ne.s32.totalorder %s142, %s143
      %p155 = scmp.eq.s32.totalorder %s44, 1
      %p156 = por %p154, %p155
      %p158 = scmp.ne.s32.totalorder %s143, %s157
      %p159 = scmp.eq.s32.totalorder %s44, 0
      %p160 = por %p158, %p159
      %s162 = sadd.s32 %s161, 1
      %p165 = scmp.eq.s32.totalorder %s38, 1
      %p166 = scmp.ne.s32.totalorder %s161, %s163
      %p167 = scmp.eq.s32.totalorder %s38, 0
      %p168 = por %p166, %p167
      %p169 = scmp.ne.s32.totalorder %s161, %s163
      %p170 = scmp.eq.s32.totalorder %s43, 1
      %p171 = por %p169, %p170
      %p172 = scmp.ne.s32.totalorder %s163, %s164
      %p173 = scmp.eq.s32.totalorder %s43, 0
      %p174 = por %p172, %p173
      %p175 = scmp.ne.s32.totalorder %s163, %s164
      %p176 = scmp.eq.s32.totalorder %s44, 1
      %p177 = por %p175, %p176
      %p179 = scmp.ne.s32.totalorder %s164, %s178
      %p180 = scmp.eq.s32.totalorder %s44, 0
      %p181 = por %p179, %p180
      %s183 = sadd.s32 %s182, 1
      %p186 = scmp.eq.s32.totalorder %s38, 1
      %p187 = scmp.ne.s32.totalorder %s182, %s184
      %p188 = scmp.eq.s32.totalorder %s38, 0
      %p189 = por %p187, %p188
      %p190 = scmp.ne.s32.totalorder %s182, %s184
      %p191 = scmp.eq.s32.totalorder %s43, 1
      %p192 = por %p190, %p191
      %p193 = scmp.ne.s32.totalorder %s184, %s185
      %p194 = scmp.eq.s32.totalorder %s43, 0
      %p195 = por %p193, %p194
      %p196 = scmp.ne.s32.totalorder %s184, %s185
      %p197 = scmp.eq.s32.totalorder %s44, 1
      %p198 = por %p196, %p197
      %p200 = scmp.ne.s32.totalorder %s185, %s199
      %p201 = scmp.eq.s32.totalorder %s44, 0
      %p202 = por %p200, %p201
      %s204 = sadd.s32 %s203, 1
      %p207 = scmp.eq.s32.totalorder %s38, 1
      %p208 = scmp.ne.s32.totalorder %s203, %s205
      %p209 = scmp.eq.s32.totalorder %s38, 0
      %p210 = por %p208, %p209
      %p211 = scmp.ne.s32.totalorder %s203, %s205
      %p212 = scmp.eq.s32.totalorder %s43, 1
      %p213 = por %p211, %p212
      %p214 = scmp.ne.s32.totalorder %s205, %s206
      %p215 = scmp.eq.s32.totalorder %s43, 0
      %p216 = por %p214, %p215
      %p217 = scmp.ne.s32.totalorder %s205, %s206
      %p218 = scmp.eq.s32.totalorder %s44, 1
      %p219 = por %p217, %p218
      %p221 = scmp.ne.s32.totalorder %s206, %s220
      %p222 = scmp.eq.s32.totalorder %s44, 0
      %p223 = por %p221, %p222
      %s225 = sadd.s32 %s224, 1
      %p228 = scmp.eq.s32.totalorder %s38, 1
      %p229 = scmp.ne.s32.totalorder %s224, %s226
      %p230 = scmp.eq.s32.totalorder %s38, 0
      %p231 = por %p229, %p230
      %p232 = scmp.ne.s32.totalorder %s224, %s226
      %p233 = scmp.eq.s32.totalorder %s43, 1
      %p234 = por %p232, %p233
      %p235 = scmp.ne.s32.totalorder %s226, %s227
      %p236 = scmp.eq.s32.totalorder %s43, 0
      %p237 = por %p235, %p236
      %p238 = scmp.ne.s32.totalorder %s226, %s227
      %p239 = scmp.eq.s32.totalorder %s44, 1
      %p240 = por %p238, %p239
      %p242 = scmp.ne.s32.totalorder %s227, %s241
      %p243 = scmp.eq.s32.totalorder %s44, 0
      %p244 = por %p242, %p243
      %s246 = sadd.s32 %s245, 1
      %p249 = scmp.eq.s32.totalorder %s38, 1
      %p250 = scmp.ne.s32.totalorder %s245, %s247
      %p251 = scmp.eq.s32.totalorder %s38, 0
      %p252 = por %p250, %p251
      %p253 = scmp.ne.s32.totalorder %s245, %s247
      %p254 = scmp.eq.s32.totalorder %s43, 1
      %p255 = por %p253, %p254
      %p256 = scmp.ne.s32.totalorder %s247, %s248
      %p257 = scmp.eq.s32.totalorder %s43, 0
      %p258 = por %p256, %p257
      %p259 = scmp.ne.s32.totalorder %s247, %s248
      %p260 = scmp.eq.s32.totalorder %s44, 1
      %p261 = por %p259, %p260
      %p263 = scmp.ne.s32.totalorder %s248, %s262
      %p264 = scmp.eq.s32.totalorder %s44, 0
      %p265 = por %p263, %p264
      %s267 = sadd.s32 %s266, 1
      %p270 = scmp.eq.s32.totalorder %s38, 1
      %p271 = scmp.ne.s32.totalorder %s266, %s268
      %p272 = scmp.eq.s32.totalorder %s38, 0
      %p273 = por %p271, %p272
      %p274 = scmp.ne.s32.totalorder %s266, %s268
      %p275 = scmp.eq.s32.totalorder %s43, 1
      %p276 = por %p274, %p275
      %p277 = scmp.ne.s32.totalorder %s268, %s269
      %p278 = scmp.eq.s32.totalorder %s43, 0
      %p279 = por %p277, %p278
      %p280 = scmp.ne.s32.totalorder %s268, %s269
      %p281 = scmp.eq.s32.totalorder %s44, 1
      %p282 = por %p280, %p281
      %p284 = scmp.ne.s32.totalorder %s269, %s283
      %p285 = scmp.eq.s32.totalorder %s44, 0
      %p286 = por %p284, %p285
      %s288 = sadd.s32 %s287, 1
      %p291 = scmp.eq.s32.totalorder %s38, 1
      %p292 = scmp.ne.s32.totalorder %s287, %s289
      %p293 = scmp.eq.s32.totalorder %s38, 0
      %p294 = por %p292, %p293
      %p295 = scmp.ne.s32.totalorder %s287, %s289
      %p296 = scmp.eq.s32.totalorder %s43, 1
      %p297 = por %p295, %p296
      %p298 = scmp.ne.s32.totalorder %s289, %s290
      %p299 = scmp.eq.s32.totalorder %s43, 0
      %p300 = por %p298, %p299
      %p301 = scmp.ne.s32.totalorder %s289, %s290
      %p302 = scmp.eq.s32.totalorder %s44, 1
      %p303 = por %p301, %p302
      %p305 = scmp.ne.s32.totalorder %s290, %s304
      %p306 = scmp.eq.s32.totalorder %s44, 0
      %p307 = por %p305, %p306
      %s309 = sadd.s32 %s308, 1
      %p312 = scmp.eq.s32.totalorder %s38, 1
      %p313 = scmp.ne.s32.totalorder %s308, %s310
      %p314 = scmp.eq.s32.totalorder %s38, 0
      %p315 = por %p313, %p314
      %p316 = scmp.ne.s32.totalorder %s308, %s310
      %p317 = scmp.eq.s32.totalorder %s43, 1
      %p318 = por %p316, %p317
      %p319 = scmp.ne.s32.totalorder %s310, %s311
      %p320 = scmp.eq.s32.totalorder %s43, 0
      %p321 = por %p319, %p320
      %p322 = scmp.ne.s32.totalorder %s310, %s311
      %p323 = scmp.eq.s32.totalorder %s44, 1
      %p324 = por %p322, %p323
      %p326 = scmp.ne.s32.totalorder %s311, %s325
      %p327 = scmp.eq.s32.totalorder %s44, 0
      %p328 = por %p326, %p327
      %s330 = sadd.s32 %s329, 1
      %p333 = scmp.eq.s32.totalorder %s38, 1
      %p334 = scmp.ne.s32.totalorder %s329, %s331
      %p335 = scmp.eq.s32.totalorder %s38, 0
      %p336 = por %p334, %p335
      %p337 = scmp.ne.s32.totalorder %s329, %s331
      %p338 = scmp.eq.s32.totalorder %s43, 1
      %p339 = por %p337, %p338
      %p340 = scmp.ne.s32.totalorder %s331, %s332
      %p341 = scmp.eq.s32.totalorder %s43, 0
      %p342 = por %p340, %p341
      %p343 = scmp.ne.s32.totalorder %s331, %s332
      %p344 = scmp.eq.s32.totalorder %s44, 1
      %p345 = por %p343, %p344
      %p347 = scmp.ne.s32.totalorder %s332, %s346
      %p348 = scmp.eq.s32.totalorder %s44, 0
      %p349 = por %p347, %p348
      %s351 = sadd.s32 %s350, 1
      %p354 = scmp.eq.s32.totalorder %s38, 1
      %p355 = scmp.ne.s32.totalorder %s350, %s352
      %p356 = scmp.eq.s32.totalorder %s38, 0
      %p357 = por %p355, %p356
      %p358 = scmp.ne.s32.totalorder %s350, %s352
      %p359 = scmp.eq.s32.totalorder %s43, 1
      %p360 = por %p358, %p359
      %p361 = scmp.ne.s32.totalorder %s352, %s353
      %p362 = scmp.eq.s32.totalorder %s43, 0
      %p363 = por %p361, %p362
      %p364 = scmp.ne.s32.totalorder %s352, %s353
      %p365 = scmp.eq.s32.totalorder %s44, 1
      %p366 = por %p364, %p365
      %p368 = scmp.ne.s32.totalorder %s353, %s367
      %p369 = scmp.eq.s32.totalorder %s44, 0
      %p370 = por %p368, %p369
      %s372 = sadd.s32 %s371, 1
      %p375 = scmp.eq.s32.totalorder %s38, 1
      %p376 = scmp.ne.s32.totalorder %s371, %s373
      %p377 = scmp.eq.s32.totalorder %s38, 0
      %p378 = por %p376, %p377
      %p379 = scmp.ne.s32.totalorder %s371, %s373
      %p380 = scmp.eq.s32.totalorder %s43, 1
      %p381 = por %p379, %p380
      %p382 = scmp.ne.s32.totalorder %s373, %s374
      %p383 = scmp.eq.s32.totalorder %s43, 0
      %p384 = por %p382, %p383
      %p385 = scmp.ne.s32.totalorder %s373, %s374
      %p386 = scmp.eq.s32.totalorder %s44, 1
      %p387 = por %p385, %p386
      %p389 = scmp.ne.s32.totalorder %s374, %s388
      %p390 = scmp.eq.s32.totalorder %s44, 0
      %p391 = por %p389, %p390
      %s393 = sadd.s32 %s392, 1
      %p396 = scmp.eq.s32.totalorder %s38, 1
      %p397 = scmp.ne.s32.totalorder %s392, %s394
      %p398 = scmp.eq.s32.totalorder %s38, 0
      %p399 = por %p397, %p398
      %p400 = scmp.ne.s32.totalorder %s392, %s394
      %p401 = scmp.eq.s32.totalorder %s43, 1
      %p402 = por %p400, %p401
      %p403 = scmp.ne.s32.totalorder %s394, %s395
      %p404 = scmp.eq.s32.totalorder %s43, 0
      %p405 = por %p403, %p404
      %p406 = scmp.ne.s32.totalorder %s394, %s395
      %p407 = scmp.eq.s32.totalorder %s44, 1
      %p408 = por %p406, %p407
      %p410 = scmp.ne.s32.totalorder %s395, %s409
      %p411 = scmp.eq.s32.totalorder %s44, 0
      %p412 = por %p410, %p411
      %s414 = sadd.s32 %s413, 1
      %p417 = scmp.eq.s32.totalorder %s38, 1
      %p418 = scmp.ne.s32.totalorder %s413, %s415
      %p419 = scmp.eq.s32.totalorder %s38, 0
      %p420 = por %p418, %p419
      %p421 = scmp.ne.s32.totalorder %s413, %s415
      %p422 = scmp.eq.s32.totalorder %s43, 1
      %p423 = por %p421, %p422
      %p424 = scmp.ne.s32.totalorder %s415, %s416
      %p425 = scmp.eq.s32.totalorder %s43, 0
      %p426 = por %p424, %p425
      %p427 = scmp.ne.s32.totalorder %s415, %s416
      %p428 = scmp.eq.s32.totalorder %s44, 1
      %p429 = por %p427, %p428
      %p431 = scmp.ne.s32.totalorder %s416, %s430
      %p432 = scmp.eq.s32.totalorder %s44, 0
      %p433 = por %p431, %p432
      %s434 = ssub.s32 %s38, %s45
      %p435 = scmp.eq.s32.totalorder %s434, 0
      %s437 = sadd.s32 %s436, 1
      %s438 = scalar_select %p435, %s436, %s437
      %p441 = pneg %p435
      %p442 = scmp.eq.s32.totalorder %s38, 1
      %p443 = por %p441, %p442
      %p444 = scmp.ne.s32.totalorder %s436, %s439
      %p445 = scmp.eq.s32.totalorder %s38, 0
      %p446 = por %p444, %p445
      %p447 = scmp.ne.s32.totalorder %s436, %s439
      %p448 = scmp.eq.s32.totalorder %s43, 1
      %p449 = por %p447, %p448
      %p450 = scmp.ne.s32.totalorder %s439, %s440
      %p451 = scmp.eq.s32.totalorder %s43, 0
      %p452 = por %p450, %p451
      %p453 = scmp.ne.s32.totalorder %s439, %s440
      %p454 = scmp.eq.s32.totalorder %s44, 1
      %p455 = por %p453, %p454
      %p457 = scmp.ne.s32.totalorder %s440, %s456
      %p458 = scmp.eq.s32.totalorder %s44, 0
      %p459 = por %p457, %p458
      %s460 = ssub.s32 %s38, %s45
      %p461 = scmp.eq.s32.totalorder %s460, 0
      %s463 = sadd.s32 %s462, 1
      %s464 = scalar_select %p461, %s462, %s463
      %p467 = pneg %p461
      %p468 = scmp.eq.s32.totalorder %s38, 1
      %p469 = por %p467, %p468
      %p470 = scmp.ne.s32.totalorder %s462, %s465
      %p471 = scmp.eq.s32.totalorder %s38, 0
      %p472 = por %p470, %p471
      %p473 = scmp.ne.s32.totalorder %s462, %s465
      %p474 = scmp.eq.s32.totalorder %s43, 1
      %p475 = por %p473, %p474
      %p476 = scmp.ne.s32.totalorder %s465, %s466
      %p477 = scmp.eq.s32.totalorder %s43, 0
      %p478 = por %p476, %p477
      %p479 = scmp.ne.s32.totalorder %s465, %s466
      %p480 = scmp.eq.s32.totalorder %s44, 1
      %p481 = por %p479, %p480
      %p483 = scmp.ne.s32.totalorder %s466, %s482
      %p484 = scmp.eq.s32.totalorder %s44, 0
      %p485 = por %p483, %p484
      %s486 = ssub.s32 %s38, %s45
      %p487 = scmp.eq.s32.totalorder %s486, 0
      %s489 = sadd.s32 %s488, 1
      %s490 = scalar_select %p487, %s488, %s489
      %p493 = pneg %p487
      %p494 = scmp.eq.s32.totalorder %s38, 1
      %p495 = por %p493, %p494
      %p496 = scmp.ne.s32.totalorder %s488, %s491
      %p497 = scmp.eq.s32.totalorder %s38, 0
      %p498 = por %p496, %p497
      %p499 = scmp.ne.s32.totalorder %s488, %s491
      %p500 = scmp.eq.s32.totalorder %s43, 1
      %p501 = por %p499, %p500
      %p502 = scmp.ne.s32.totalorder %s491, %s492
      %p503 = scmp.eq.s32.totalorder %s43, 0
      %p504 = por %p502, %p503
      %p505 = scmp.ne.s32.totalorder %s491, %s492
      %p506 = scmp.eq.s32.totalorder %s44, 1
      %p507 = por %p505, %p506
      %p509 = scmp.ne.s32.totalorder %s492, %s508
      %p510 = scmp.eq.s32.totalorder %s44, 0
      %p511 = por %p509, %p510
      %s512 = ssub.s32 %s38, %s45
      %p513 = scmp.eq.s32.totalorder %s512, 0
      %s515 = sadd.s32 %s514, 1
      %s516 = scalar_select %p513, %s514, %s515
      %p519 = pneg %p513
      %p520 = scmp.eq.s32.totalorder %s38, 1
      %p521 = por %p519, %p520
      %p522 = scmp.ne.s32.totalorder %s514, %s517
      %p523 = scmp.eq.s32.totalorder %s38, 0
      %p524 = por %p522, %p523
      %p525 = scmp.ne.s32.totalorder %s514, %s517
      %p526 = scmp.eq.s32.totalorder %s43, 1
      %p527 = por %p525, %p526
      %p528 = scmp.ne.s32.totalorder %s517, %s518
      %p529 = scmp.eq.s32.totalorder %s43, 0
      %p530 = por %p528, %p529
      %p531 = scmp.ne.s32.totalorder %s517, %s518
      %p532 = scmp.eq.s32.totalorder %s44, 1
      %p533 = por %p531, %p532
      %p535 = scmp.ne.s32.totalorder %s518, %s534
      %p536 = scmp.eq.s32.totalorder %s44, 0
      %p537 = por %p535, %p536
      %p538 = scmp.le.s32.totalorder 1, %s38
      %p539 = scmp.lt.s32.totalorder %s38, 3
      %p540 = pnand %p538, %p539
      %p541 = pneg %p540
      // Predicated region
      $region9: #{tpu_custom_call.1} parent=5 // pred_check
        _
      $region10: #{tpu_custom_call.1} parent=5 // pred_check_branch
        %543 = sbr.rel (%p540) target = $region12
      $region11: #{tpu_custom_call.1} parent=5 // pred_region
        %s544 = ssub.s32 %s38, 1
        // Predicated region
        $region13: #{tpu_custom_call.1} parent=11 // pred_check
          %p545 = pneg %p111
        $region14: #{tpu_custom_call.1} parent=11 // pred_check_branch
          %547 = sbr.rel (%p545) target = $region16
        $region15: #{tpu_custom_call.1} parent=11 // pred_region
          _
        $region16: #{tpu_custom_call.1} parent=11 // pred_fallthru
          _
        // Predicated region
        $region17: #{tpu_custom_call.1} parent=11 // pred_check
          %p548 = pneg %p132
        $region18: #{tpu_custom_call.1} parent=11 // pred_check_branch
          %550 = sbr.rel (%p548) target = $region20
        $region19: #{tpu_custom_call.1} parent=11 // pred_region
          _
        $region20: #{tpu_custom_call.1} parent=11 // pred_fallthru
          _
        // Predicated region
        $region21: #{tpu_custom_call.1} parent=11 // pred_check
          %p551 = pneg %p153
        $region22: #{tpu_custom_call.1} parent=11 // pred_check_branch
          %553 = sbr.rel (%p551) target = $region24
        $region23: #{tpu_custom_call.1} parent=11 // pred_region
          %555 = vsyncadd [#allocation3], 0
          %s556 = sshll.u32 %s4, 4
          %s557 = int_to_ptr.hbm [resolvable:$true] %s556
          %s558 = sshll.u32 [#allocation2], 4
          %s559 = int_to_ptr.vmem [resolvable:$true] %s558
          %564 = dma.hbm_to_vmem [thread:$0]  %s557, 256, %s559, [#allocation3], 64, 64, 4
        $region24: #{tpu_custom_call.1} parent=11 // pred_fallthru
          _
        // Predicated region
        $region25: #{tpu_custom_call.1} parent=11 // pred_check
          %p565 = pneg %p174
        $region26: #{tpu_custom_call.1} parent=11 // pred_check_branch
          %567 = sbr.rel (%p565) target = $region28
        $region27: #{tpu_custom_call.1} parent=11 // pred_region
          _
        $region28: #{tpu_custom_call.1} parent=11 // pred_fallthru
          _
        // Predicated region
        $region29: #{tpu_custom_call.1} parent=11 // pred_check
          %p568 = pneg %p195
        $region30: #{tpu_custom_call.1} parent=11 // pred_check_branch
          %570 = sbr.rel (%p568) target = $region32
        $region31: #{tpu_custom_call.1} parent=11 // pred_region
          _
        $region32: #{tpu_custom_call.1} parent=11 // pred_fallthru
          _
        // Predicated region
        $region33: #{tpu_custom_call.1} parent=11 // pred_check
          %p571 = pneg %p216
        $region34: #{tpu_custom_call.1} parent=11 // pred_check_branch
          %573 = sbr.rel (%p571) target = $region36
        $region35: #{tpu_custom_call.1} parent=11 // pred_region
          %575 = vsyncadd [#allocation6], 0
          %s577 = sshll.u32 %s7, 4
          %s578 = int_to_ptr.hbm [resolvable:$true] %s577
          %s579 = sshll.u32 [#allocation5], 4
          %s580 = int_to_ptr.vmem [resolvable:$true] %s579
          %582 = dma.hbm_to_vmem [thread:$0]  %s578, 64, %s580, [#allocation6]
        $region36: #{tpu_custom_call.1} parent=11 // pred_fallthru
          _
        // Predicated region
        $region37: #{tpu_custom_call.1} parent=11 // pred_check
          %p583 = pneg %p237
        $region38: #{tpu_custom_call.1} parent=11 // pred_check_branch
          %585 = sbr.rel (%p583) target = $region40
        $region39: #{tpu_custom_call.1} parent=11 // pred_region
          %587 = vsyncadd [#allocation6], 0
          %s588 = sshll.u32 %s8, 4
          %s589 = int_to_ptr.hbm [resolvable:$true] %s588
          %s590 = sshll.u32 [#allocation7], 4
          %s591 = int_to_ptr.vmem [resolvable:$true] %s590
          %596 = dma.hbm_to_vmem [thread:$0]  %s589, 1024, %s591, [#allocation6], 64, 64, 4
        $region40: #{tpu_custom_call.1} parent=11 // pred_fallthru
          _
        // Predicated region
        $region41: #{tpu_custom_call.1} parent=11 // pred_check
          %p597 = pneg %p258
        $region42: #{tpu_custom_call.1} parent=11 // pred_check_branch
          %599 = sbr.rel (%p597) target = $region44
        $region43: #{tpu_custom_call.1} parent=11 // pred_region
          _
        $region44: #{tpu_custom_call.1} parent=11 // pred_fallthru
          _
        // Predicated region
        $region45: #{tpu_custom_call.1} parent=11 // pred_check
          %p600 = pneg %p279
        $region46: #{tpu_custom_call.1} parent=11 // pred_check_branch
          %602 = sbr.rel (%p600) target = $region48
        $region47: #{tpu_custom_call.1} parent=11 // pred_region
          _
        $region48: #{tpu_custom_call.1} parent=11 // pred_fallthru
          _
        // Predicated region
        $region49: #{tpu_custom_call.1} parent=11 // pred_check
          %p603 = pneg %p300
        $region50: #{tpu_custom_call.1} parent=11 // pred_check_branch
          %605 = sbr.rel (%p603) target = $region52
        $region51: #{tpu_custom_call.1} parent=11 // pred_region
          %607 = vsyncadd [#allocation9], 0
          %s609 = sshll.u32 %s11, 4
          %s610 = int_to_ptr.hbm [resolvable:$true] %s609
          %s611 = sshll.u32 [#allocation8], 4
          %s612 = int_to_ptr.vmem [resolvable:$true] %s611
          %614 = dma.hbm_to_vmem [thread:$0]  %s610, 64, %s612, [#allocation9]
        $region52: #{tpu_custom_call.1} parent=11 // pred_fallthru
          _
        // Predicated region
        $region53: #{tpu_custom_call.1} parent=11 // pred_check
          %p615 = pneg %p321
        $region54: #{tpu_custom_call.1} parent=11 // pred_check_branch
          %617 = sbr.rel (%p615) target = $region56
        $region55: #{tpu_custom_call.1} parent=11 // pred_region
          %619 = vsyncadd [#allocation9], 0
          %s620 = sshll.u32 %s12, 4
          %s621 = int_to_ptr.hbm [resolvable:$true] %s620
          %s622 = sshll.u32 [#allocation10], 4
          %s623 = int_to_ptr.vmem [resolvable:$true] %s622
          %628 = dma.hbm_to_vmem [thread:$0]  %s621, 256, %s623, [#allocation9], 64, 64, 4
        $region56: #{tpu_custom_call.1} parent=11 // pred_fallthru
          _
        // Predicated region
        $region57: #{tpu_custom_call.1} parent=11 // pred_check
          %p629 = pneg %p342
        $region58: #{tpu_custom_call.1} parent=11 // pred_check_branch
          %631 = sbr.rel (%p629) target = $region60
        $region59: #{tpu_custom_call.1} parent=11 // pred_region
          _
        $region60: #{tpu_custom_call.1} parent=11 // pred_fallthru
          _
        // Predicated region
        $region61: #{tpu_custom_call.1} parent=11 // pred_check
          %p632 = pneg %p363
        $region62: #{tpu_custom_call.1} parent=11 // pred_check_branch
          %634 = sbr.rel (%p632) target = $region64
        $region63: #{tpu_custom_call.1} parent=11 // pred_region
          %636 = vsyncadd [#allocation12], 0
          %s637 = sshll.u32 %s14, 4
          %s638 = int_to_ptr.hbm [resolvable:$true] %s637
          %s639 = sshll.u32 [#allocation11], 4
          %s640 = int_to_ptr.vmem [resolvable:$true] %s639
          %645 = dma.hbm_to_vmem [thread:$0]  %s638, 256, %s640, [#allocation12], 64, 64, 4
        $region64: #{tpu_custom_call.1} parent=11 // pred_fallthru
          _
        // Predicated region
        $region65: #{tpu_custom_call.1} parent=11 // pred_check
          %p646 = pneg %p384
        $region66: #{tpu_custom_call.1} parent=11 // pred_check_branch
          %648 = sbr.rel (%p646) target = $region68
        $region67: #{tpu_custom_call.1} parent=11 // pred_region
          _
        $region68: #{tpu_custom_call.1} parent=11 // pred_fallthru
          _
        // Predicated region
        $region69: #{tpu_custom_call.1} parent=11 // pred_check
          %p649 = pneg %p405
        $region70: #{tpu_custom_call.1} parent=11 // pred_check_branch
          %651 = sbr.rel (%p649) target = $region72
        $region71: #{tpu_custom_call.1} parent=11 // pred_region
          _
        $region72: #{tpu_custom_call.1} parent=11 // pred_fallthru
          _
        // Predicated region
        $region73: #{tpu_custom_call.1} parent=11 // pred_check
          %p652 = pneg %p426
        $region74: #{tpu_custom_call.1} parent=11 // pred_check_branch
          %654 = sbr.rel (%p652) target = $region76
        $region75: #{tpu_custom_call.1} parent=11 // pred_region
          _
        $region76: #{tpu_custom_call.1} parent=11 // pred_fallthru
          _
      $region12: #{tpu_custom_call.1} parent=5 // pred_fallthru
        _
      %p655 = scmp.lt.s32.totalorder %s38, 2
      // Predicated region
      $region77: #{tpu_custom_call.1} parent=5 // pred_check
        %p656 = pneg %p655
      $region78: #{tpu_custom_call.1} parent=5 // pred_check_branch
        %658 = sbr.rel (%p656) target = $region80
      $region79: #{tpu_custom_call.1} parent=5 // pred_region
        // Predicated region
        $region81: #{tpu_custom_call.1} parent=79 // pred_check
          %p659 = pneg %p58
        $region82: #{tpu_custom_call.1} parent=79 // pred_check_branch
          %661 = sbr.rel (%p659) target = $region84
        $region83: #{tpu_custom_call.1} parent=79 // pred_region
          %p662 = scmp.lt.s32.totalorder %s38, 1
          %s663 = scalar_select %p662, %s38, 1
          %s664 = smul.addr %s663, 8
          %s665 = scalar_lea.vmem %s0, %s664
        $region84: #{tpu_custom_call.1} parent=79 // pred_fallthru
          _
        // Predicated region
        $region85: #{tpu_custom_call.1} parent=79 // pred_check
          %p666 = pneg %p84
        $region86: #{tpu_custom_call.1} parent=79 // pred_check_branch
          %668 = sbr.rel (%p666) target = $region88
        $region87: #{tpu_custom_call.1} parent=79 // pred_region
          %p669 = scmp.lt.s32.totalorder %s38, 1
          %s670 = scalar_select %p669, %s38, 1
          %s671 = smul.addr %s670, 8
          %s672 = smul.addr %s671, 4
          %s673 = scalar_lea.vmem %s1, %s672
        $region88: #{tpu_custom_call.1} parent=79 // pred_fallthru
          _
      $region80: #{tpu_custom_call.1} parent=5 // pred_fallthru
        _
      %p674 = scmp.le.s32.totalorder 1, %s38
      %p675 = scmp.lt.s32.totalorder %s38, 3
      %p676 = pnand %p674, %p675
      %p677 = pneg %p676
      // Predicated region
      $region89: #{tpu_custom_call.1} parent=5 // pred_check
        _
      $region90: #{tpu_custom_call.1} parent=5 // pred_check_branch
        %679 = sbr.rel (%p676) target = $region92
      $region91: #{tpu_custom_call.1} parent=5 // pred_region
        %s680 = ssub.s32 %s38, 1
        // Predicated region
        $region93: #{tpu_custom_call.1} parent=91 // pred_check
          %p681 = pneg %p153
        $region94: #{tpu_custom_call.1} parent=91 // pred_check_branch
          %683 = sbr.rel (%p681) target = $region96
        $region95: #{tpu_custom_call.1} parent=91 // pred_region
          %685 = dma.done [#allocation3], 256
        $region96: #{tpu_custom_call.1} parent=91 // pred_fallthru
          _
        // Predicated region
        $region97: #{tpu_custom_call.1} parent=91 // pred_check
          %p686 = pneg %p216
        $region98: #{tpu_custom_call.1} parent=91 // pred_check_branch
          %688 = sbr.rel (%p686) target = $region100
        $region99: #{tpu_custom_call.1} parent=91 // pred_region
          %690 = dma.done [#allocation6], 64
        $region100: #{tpu_custom_call.1} parent=91 // pred_fallthru
          _
        // Predicated region
        $region101: #{tpu_custom_call.1} parent=91 // pred_check
          %p691 = pneg %p237
        $region102: #{tpu_custom_call.1} parent=91 // pred_check_branch
          %693 = sbr.rel (%p691) target = $region104
        $region103: #{tpu_custom_call.1} parent=91 // pred_region
          %695 = dma.done [#allocation6], 1024
        $region104: #{tpu_custom_call.1} parent=91 // pred_fallthru
          _
        // Predicated region
        $region105: #{tpu_custom_call.1} parent=91 // pred_check
          %p696 = pneg %p300
        $region106: #{tpu_custom_call.1} parent=91 // pred_check_branch
          %698 = sbr.rel (%p696) target = $region108
        $region107: #{tpu_custom_call.1} parent=91 // pred_region
          %700 = dma.done [#allocation9], 64
        $region108: #{tpu_custom_call.1} parent=91 // pred_fallthru
          _
        // Predicated region
        $region109: #{tpu_custom_call.1} parent=91 // pred_check
          %p701 = pneg %p321
        $region110: #{tpu_custom_call.1} parent=91 // pred_check_branch
          %703 = sbr.rel (%p701) target = $region112
        $region111: #{tpu_custom_call.1} parent=91 // pred_region
          %705 = dma.done [#allocation9], 256
        $region112: #{tpu_custom_call.1} parent=91 // pred_fallthru
          _
        // Predicated region
        $region113: #{tpu_custom_call.1} parent=91 // pred_check
          %p706 = pneg %p363
        $region114: #{tpu_custom_call.1} parent=91 // pred_check_branch
          %708 = sbr.rel (%p706) target = $region116
        $region115: #{tpu_custom_call.1} parent=91 // pred_region
          %710 = dma.done [#allocation12], 256
        $region116: #{tpu_custom_call.1} parent=91 // pred_fallthru
          _
        %p711 = scmp.lt.s32.totalorder %s43, 1
        %s712 = scalar_select %p711, %s43, 1
        %s713 = smul.addr %s712, 8
        %s714 = scalar_lea.vmem %s0, %s713
        %p715 = pneg %p64
        %p716 = pneg %p61
        %p717 = scmp.lt.s32.totalorder %s43, 1
        %s718 = scalar_select %p717, %s43, 1
        %s719 = smul.addr %s718, 8
        %s720 = smul.addr %s719, 4
        %s721 = scalar_lea.vmem %s1, %s720
        %p722 = pneg %p90
        %p723 = pneg %p87
        %p724 = pneg %p111
        %p725 = pneg %p108
        %p726 = pneg %p132
        %p727 = pneg %p129
        %p728 = pneg %p153
        %p729 = pneg %p150
        %p730 = pneg %p174
        %p731 = pneg %p171
        %p732 = pneg %p195
        %p733 = pneg %p192
        %p734 = pneg %p216
        %p735 = pneg %p213
        %p736 = pneg %p237
        %p737 = pneg %p234
        %p738 = pneg %p258
        %p739 = pneg %p255
        %p740 = pneg %p279
        %p741 = pneg %p276
        %p742 = pneg %p300
        %p743 = pneg %p297
        %p744 = pneg %p321
        %p745 = pneg %p318
        %p746 = pneg %p342
        %p747 = pneg %p339
        %p748 = pneg %p363
        %p749 = pneg %p360
        %p750 = pneg %p384
        %p751 = pneg %p381
        %p752 = pneg %p405
        %p753 = pneg %p402
        %p754 = pneg %p426
        %p755 = pneg %p423
        %p756 = pneg %p452
        %p757 = pneg %p449
        %s758 = sand.u32 %s439, 1
        %s759 = scalar_lea.sflag [#allocation4], %s758
        %s760 = sand.u32 %s439, 1
        %s761 = smul.addr %s760, 8
        %s762 = scalar_lea.vmem [#allocation13], %s761
        %p763 = pneg %p478
        %p764 = pneg %p475
        %p765 = scmp.lt.s32.totalorder %s43, 1
        %s766 = scalar_select %p765, %s43, 1
        %s767 = smul.addr %s766, 8
        %s768 = smul.addr %s767, 4
        %s769 = scalar_lea.vmem %s19, %s768
        %p770 = pneg %p504
        %p771 = pneg %p501
        %s772 = sand.u32 %s43, 1
        %s773 = scalar_lea.sflag [#allocation15], %s772
        %s774 = sand.u32 %s491, 1
        %s775 = smul.addr %s774, 4
        %s776 = scalar_lea.vmem [#allocation14], %s775
        %p777 = pneg %p530
        %p778 = pneg %p527
        %s779 = sand.u32 %s43, 1
        %s780 = scalar_lea.sflag [#allocation15], %s779
        %s781 = sand.u32 %s517, 1
        %s782 = scalar_lea.vmem [#allocation16], %s781
        %p783 = scmp.lt.s32.totalorder %s43, 1
        %s784 = scalar_select %p783, %s43, 1
        %s785 = smul.addr %s784, 8
        %s786 = scalar_lea.vmem %s0, %s785
        %p787 = scmp.lt.s32.totalorder %s43, 1
        %s788 = scalar_select %p787, %s43, 1
        %s789 = smul.addr %s788, 8
        %s790 = smul.addr %s789, 4
        %s791 = scalar_lea.vmem %s1, %s790
        %p792 = scmp.lt.s32.totalorder %s43, 1
        %s793 = scalar_select %p792, %s43, 1
        %s794 = smul.addr %s793, 8
        %s795 = smul.addr %s794, 4
        %s796 = scalar_lea.vmem %s19, %s795
        %v798 = vld [vmem:[%s786] sm:$0xff]
        %v799 = vld [vmem:[%s791] sm:$0xf]
        %v800 = vld [vmem:[%s791 + $0x4] sm:$0xf]
        %v801 = vld [vmem:[%s791 + $0x8] sm:$0xf]
        %v802 = vld [vmem:[%s791 + $0xc] sm:$0xf]
        %v803 = vld [vmem:[%s791 + $0x10] sm:$0xf]
        %v804 = vld [vmem:[%s791 + $0x14] sm:$0xf]
        %v805 = vld [vmem:[%s791 + $0x18] sm:$0xf]
        %v806 = vld [vmem:[%s791 + $0x1c] sm:$0xf]
        %v807 = vld [vmem:[%s2] sm:$0xf]
        %v808 = vld [vmem:[%s2 + $0x4] sm:$0xf]
        %v809 = vld [vmem:[%s2 + $0x8] sm:$0xf]
        %v810 = vld [vmem:[%s2 + $0xc] sm:$0xf]
        %v811 = vld [vmem:[%s2 + $0x10] sm:$0xf]
        %v812 = vld [vmem:[%s2 + $0x14] sm:$0xf]
        %v813 = vld [vmem:[%s2 + $0x18] sm:$0xf]
        %v814 = vld [vmem:[%s2 + $0x1c] sm:$0xf]
        %v815 = vunpack.c.l.bf16 %v799
        %v816 = vunpack.c.l.bf16 %v800
        %v817 = vunpack.c.l.bf16 %v801
        %v818 = vunpack.c.l.bf16 %v802
        %v819 = vunpack.c.l.bf16 %v803
        %v820 = vunpack.c.l.bf16 %v804
        %v821 = vunpack.c.l.bf16 %v805
        %v822 = vunpack.c.l.bf16 %v806
        %v823 = vunpack.c.l.bf16 %v807
        %v824 = vunpack.c.l.bf16 %v808
        %v825 = vunpack.c.l.bf16 %v809
        %v826 = vunpack.c.l.bf16 %v810
        %v827 = vunpack.c.l.bf16 %v811
        %v828 = vunpack.c.l.bf16 %v812
        %v829 = vunpack.c.l.bf16 %v813
        %v830 = vunpack.c.l.bf16 %v814
        %v831 = vadd.f32 %v815, %v823
        %v832 = vadd.f32 %v816, %v824
        %v833 = vadd.f32 %v817, %v825
        %v834 = vadd.f32 %v818, %v826
        %v835 = vadd.f32 %v819, %v827
        %v836 = vadd.f32 %v820, %v828
        %v837 = vadd.f32 %v821, %v829
        %v838 = vadd.f32 %v822, %v830
        %v839 = vpack.c.bf16 %v832, %v831
        %v840 = vpack.c.bf16 %v834, %v833
        %v841 = vpack.c.bf16 %v836, %v835
        %v842 = vpack.c.bf16 %v838, %v837
        %v843 = vld [vmem:[%s3] sm:$0xf]
        %v844 = vld [vmem:[%s3 + $0x4] sm:$0xf]
        %v845 = vld [vmem:[%s3 + $0x8] sm:$0xf]
        %v846 = vld [vmem:[%s3 + $0xc] sm:$0xf]
        %v851 = vunpack.c.l.b16 %v843
        %v852 = vunpack.c.l.b16 %v844
        %v853 = vunpack.c.l.b16 %v845
        %v854 = vunpack.c.l.b16 %v846
        %v855 = vpack.c.b16 %v852, %v851
        %v856 = vpack.c.b16 %v854, %v853
        %vm859 = vcmask 261120
        %v861 = vsel %vm859, %v839, 0
        %v864 = vsel %vm859, %v840, 0
        %v867 = vsel %vm859, %v841, 0
        %v870 = vsel %vm859, %v842, 0
        %872 = vmatpush.bf16.msra.mxu0 0
        %873 = vmatpush.bf16.msra.mxu0 0
        %874 = vmatpush.bf16.msra.mxu0 0
        %875 = vmatpush.bf16.msra.mxu0 0
        %876 = vmatpush.bf16.msra.mxu0 0
        %877 = vmatpush.bf16.msra.mxu0 0
        %878 = vmatpush.bf16.msra.mxu0 %v856
        %879 = vmatpush.bf16.msra.mxu0 %v855
        %880 = vmatmul.bf16.gmra.mxu0 %v861
        %v881 = vpop.f32.mrf.mxu0
        %v882 = vadd.f32 0.0, %v881
        %v883 = vpop.f32.mrf.mxu0
        %v884 = vadd.f32 0.0, %v883
        %885 = vmatmul.bf16.gmra.mxu0 %v864
        %v886 = vpop.f32.mrf.mxu0
        %v887 = vadd.f32 0.0, %v886
        %v888 = vpop.f32.mrf.mxu0
        %v889 = vadd.f32 0.0, %v888
        %890 = vmatmul.bf16.gmra.mxu0 %v867
        %v891 = vpop.f32.mrf.mxu0
        %v892 = vadd.f32 0.0, %v891
        %v893 = vpop.f32.mrf.mxu0
        %v894 = vadd.f32 0.0, %v893
        %895 = vmatmul.bf16.gmra.mxu0 %v870
        %v896 = vpop.f32.mrf.mxu0
        %v897 = vadd.f32 0.0, %v896
        %v898 = vpop.f32.mrf.mxu0
        %v899 = vadd.f32 0.0, %v898
        %900 = vdwg.mxu0
        %v901 = vpack.c.bf16 %v882, %v882
        %v902 = vpack.c.bf16 %v884, %v884
        %v903 = vpack.c.bf16 %v887, %v887
        %v904 = vpack.c.bf16 %v889, %v889
        %v905 = vpack.c.bf16 %v892, %v892
        %v906 = vpack.c.bf16 %v894, %v894
        %v907 = vpack.c.bf16 %v897, %v897
        %v908 = vpack.c.bf16 %v899, %v899
        %v909 = vld [vmem:[#allocation2] sm:$0xf]
        %v910 = vld [vmem:[#allocation2 + $0x4] sm:$0xf]
        %v911 = vld [vmem:[#allocation2 + $0x8] sm:$0xf]
        %v912 = vld [vmem:[#allocation2 + $0xc] sm:$0xf]
        %v921 = vunpack.c.l.b16 %v799
        %v922 = vunpack.c.l.b16 %v800
        %v923 = vunpack.c.l.b16 %v801
        %v924 = vunpack.c.l.b16 %v802
        %v925 = vunpack.c.l.b16 %v803
        %v926 = vunpack.c.l.b16 %v804
        %v927 = vunpack.c.l.b16 %v805
        %v928 = vunpack.c.l.b16 %v806
        %v929 = vpack.c.b16 %v922, %v921
        %v930 = vpack.c.b16 %v924, %v923
        %v931 = vpack.c.b16 %v926, %v925
        %v932 = vpack.c.b16 %v928, %v927
        %v937 = vunpack.c.l.b16 %v909
        %v938 = vunpack.c.l.b16 %v910
        %v939 = vunpack.c.l.b16 %v911
        %v940 = vunpack.c.l.b16 %v912
        %v941 = vpack.c.b16 %v938, %v937
        %v942 = vpack.c.b16 %v940, %v939
        %v946 = vsel %vm859, %v929, 0
        %v949 = vsel %vm859, %v930, 0
        %v952 = vsel %vm859, %v931, 0
        %v955 = vsel %vm859, %v932, 0
        %957 = vmatpush.bf16.msra.mxu0 0
        %958 = vmatpush.bf16.msra.mxu0 0
        %959 = vmatpush.bf16.msra.mxu0 0
        %960 = vmatpush.bf16.msra.mxu0 0
        %961 = vmatpush.bf16.msra.mxu0 0
        %962 = vmatpush.bf16.msra.mxu0 0
        %963 = vmatpush.bf16.msra.mxu0 %v942
        %964 = vmatpush.bf16.msra.mxu0 %v941
        %965 = vmatmul.bf16.gmra.mxu0 %v946
        %v966 = vpop.f32.mrf.mxu0
        %v967 = vadd.f32 0.0, %v966
        %v968 = vpop.f32.mrf.mxu0
        %v969 = vadd.f32 0.0, %v968
        %970 = vmatmul.bf16.gmra.mxu0 %v949
        %v971 = vpop.f32.mrf.mxu0
        %v972 = vadd.f32 0.0, %v971
        %v973 = vpop.f32.mrf.mxu0
        %v974 = vadd.f32 0.0, %v973
        %975 = vmatmul.bf16.gmra.mxu0 %v952
        %v976 = vpop.f32.mrf.mxu0
        %v977 = vadd.f32 0.0, %v976
        %v978 = vpop.f32.mrf.mxu0
        %v979 = vadd.f32 0.0, %v978
        %980 = vmatmul.bf16.gmra.mxu0 %v955
        %v981 = vpop.f32.mrf.mxu0
        %v982 = vadd.f32 0.0, %v981
        %v983 = vpop.f32.mrf.mxu0
        %v984 = vadd.f32 0.0, %v983
        %985 = vdwg.mxu0
        %v986 = vpack.c.bf16 %v969, %v967
        %v987 = vpack.c.bf16 %v974, %v972
        %v988 = vpack.c.bf16 %v979, %v977
        %v989 = vpack.c.bf16 %v984, %v982
        %v990 = vld [vmem:[%s5] sm:$0xf]
        %v991 = vld [vmem:[%s5 + $0x4] sm:$0xf]
        %v992 = vld [vmem:[%s5 + $0x8] sm:$0xf]
        %v993 = vld [vmem:[%s5 + $0xc] sm:$0xf]
        %v994 = vpack.c.bf16 %v798, %v798
        %v999 = vunpack.c.l.b16 %v990
        %v1000 = vunpack.c.l.b16 %v991
        %v1001 = vunpack.c.l.b16 %v992
        %v1002 = vunpack.c.l.b16 %v993
        %v1003 = vpack.c.b16 %v1000, %v999
        %v1004 = vpack.c.b16 %v1002, %v1001
        %v1008 = vsel %vm859, %v994, 0
        %1010 = vmatpush.bf16.msra.mxu0 0
        %1011 = vmatpush.bf16.msra.mxu0 0
        %1012 = vmatpush.bf16.msra.mxu0 0
        %1013 = vmatpush.bf16.msra.mxu0 0
        %1014 = vmatpush.bf16.msra.mxu0 0
        %1015 = vmatpush.bf16.msra.mxu0 0
        %1016 = vmatpush.bf16.msra.mxu0 %v1004
        %1017 = vmatpush.bf16.msra.mxu0 %v1003
        %1018 = vmatmul.bf16.gmra.mxu0 %v1008
        %v1019 = vpop.f32.mrf.mxu0
        %v1020 = vadd.f32 0.0, %v1019
        %v1021 = vpop.f32.mrf.mxu0
        %1022 = vdwg.mxu0
        %v1023 = vpack.c.bf16 %v1020, %v1020
        %v1032 = vunpack.c.l.b16 %v901
        %v1033 = vunpack.c.l.b16 %v902
        %v1034 = vunpack.c.l.b16 %v903
        %v1035 = vunpack.c.l.b16 %v904
        %v1036 = vunpack.c.l.b16 %v905
        %v1037 = vunpack.c.l.b16 %v906
        %v1038 = vunpack.c.l.b16 %v907
        %v1039 = vunpack.c.l.b16 %v908
        %v1040 = vpack.c.b16 %v1033, %v1032
        %v1041 = vpack.c.b16 %v1035, %v1034
        %v1042 = vpack.c.b16 %v1037, %v1036
        %v1043 = vpack.c.b16 %v1039, %v1038
        %v1045 = vsel %vm859, %v1023, 0
        %v1048 = vsel %vm859, %v1040, 0
        %v1051 = vsel %vm859, %v1041, 0
        %v1054 = vsel %vm859, %v1042, 0
        %v1057 = vsel %vm859, %v1043, 0
        %1059 = vmatpush.bf16.xpose.msra.mxu0 0
        %1060 = vmatpush.bf16.xpose.msra.mxu0 0
        %1061 = vmatpush.bf16.xpose.msra.mxu0 0
        %1062 = vmatpush.bf16.xpose.msra.mxu0 0
        %1063 = vmatpush.bf16.xpose.msra.mxu0 %v1057
        %1064 = vmatpush.bf16.xpose.msra.mxu0 %v1054
        %1065 = vmatpush.bf16.xpose.msra.mxu0 %v1051
        %1066 = vmatpush.bf16.xpose.msra.mxu0 %v1048
        %1067 = vmatmul.bf16.gmra.mxu0 %v1045
        %v1068 = vpop.f32.mrf.mxu0
        %v1069 = vadd.f32 0.0, %v1068
        %v1070 = vpop.f32.mrf.mxu0
        %1071 = vdwg.mxu0
        %v1072 = vmul.f32 %v1069, 0.17677669
        %vm1073 = vcmask 523264
        %v1074 = vsel %vm1073, %v1072, -inf
        %1075 = vmax.xlane.f32.xlu0 %v1074
        %v1076 = vpop.xlane.xlu0 %1075
        %v1077 = vsub.f32 %v1072, %v1076
        %v1078 = vmul.f32 %v1077, 1.442695
        %v1079 = vpow.pop %v1078
        %v1080 = vsel %vm1073, %v1079, 0.0
        %1081 = vadd.xlane.f32.xlu0 %v1080
        %v1082 = vpop.xlane.xlu0 %1081
        %v1083 = vrcp.pop %v1082
        %v1084 = vmul.f32 %v1082, %v1083
        %v1085 = vsub.f32 1.0, %v1084
        %v1086 = vmul.f32 %v1083, %v1085
        %v1087 = vadd.f32 %v1083, %v1086
        %vm1088 = vweird.f32 %v1082
        %vm1089 = vweird.f32 %v1083
        %vm1090 = vmor %vm1088, %vm1089
        %v1091 = vsel %vm1090, %v1083, %v1087
        %v1092 = vand.u32 2147483647, %v1082
        %vm1093 = vcmp.eq.f32.partialorder %v1092, 8.507059e+37
        %v1094 = vand.u32 %v1082, 2147483648
        %v1095 = vor.u32 1.1754944e-38, %v1094
        %v1096 = vsel %vm1093, %v1095, %v1091
        %v1097 = vmul.f32 %v1079, %v1096
        %v1098 = vpack.c.bf16 %v1097, %v1097
        %v1100 = vsel %vm1073, %v1098, 0
        %1102 = vmatpush.bf16.msra.mxu0 0
        %1103 = vmatpush.bf16.msra.mxu0 0
        %1104 = vmatpush.bf16.msra.mxu0 0
        %1105 = vmatpush.bf16.msra.mxu0 0
        %1106 = vmatpush.bf16.msra.mxu0 %v989
        %1107 = vmatpush.bf16.msra.mxu0 %v988
        %1108 = vmatpush.bf16.msra.mxu0 %v987
        %1109 = vmatpush.bf16.msra.mxu0 %v986
        %1110 = vmatmul.bf16.gmra.mxu0 %v1100
        %v1111 = vpop.f32.mrf.mxu0
        %v1112 = vadd.f32 0.0, %v1111
        %v1113 = vpop.f32.mrf.mxu0
        %1114 = vdwg.mxu0
        %s1115 = scalar_lea.vmem %s5, 16
        %v1116 = vld [vmem:[%s1115] sm:$0xf]
        %v1117 = vld [vmem:[%s1115 + $0x4] sm:$0xf]
        %v1118 = vld [vmem:[%s1115 + $0x8] sm:$0xf]
        %v1119 = vld [vmem:[%s1115 + $0xc] sm:$0xf]
        %v1120 = vpack.c.bf16 %v1112, %v1112
        %v1125 = vunpack.c.l.b16 %v1116
        %v1126 = vunpack.c.l.b16 %v1117
        %v1127 = vunpack.c.l.b16 %v1118
        %v1128 = vunpack.c.l.b16 %v1119
        %v1129 = vpack.c.b16 %v1126, %v1125
        %v1130 = vpack.c.b16 %v1128, %v1127
        %v1134 = vsel %vm859, %v1120, 0
        %1136 = vmatpush.bf16.msra.mxu0 0
        %1137 = vmatpush.bf16.msra.mxu0 0
        %1138 = vmatpush.bf16.msra.mxu0 0
        %1139 = vmatpush.bf16.msra.mxu0 0
        %1140 = vmatpush.bf16.msra.mxu0 0
        %1141 = vmatpush.bf16.msra.mxu0 0
        %1142 = vmatpush.bf16.msra.mxu0 %v1130
        %1143 = vmatpush.bf16.msra.mxu0 %v1129
        %1144 = vmatmul.bf16.gmra.mxu0 %v1134
        %v1145 = vpop.f32.mrf.mxu0
        %v1146 = vadd.f32 0.0, %v1145
        %v1147 = vpop.f32.mrf.mxu0
        %1148 = vdwg.mxu0
        %v1149 = vadd.f32 %v798, %v1146
        %s1150 = scalar_lea.vmem %s5, 32
        %v1151 = vld [vmem:[%s1150] sm:$0xf]
        %v1152 = vld [vmem:[%s1150 + $0x4] sm:$0xf]
        %v1153 = vld [vmem:[%s1150 + $0x8] sm:$0xf]
        %v1154 = vld [vmem:[%s1150 + $0xc] sm:$0xf]
        %v1155 = vpack.c.bf16 %v1149, %v1149
        %v1160 = vunpack.c.l.b16 %v1151
        %v1161 = vunpack.c.l.b16 %v1152
        %v1162 = vunpack.c.l.b16 %v1153
        %v1163 = vunpack.c.l.b16 %v1154
        %v1164 = vpack.c.b16 %v1161, %v1160
        %v1165 = vpack.c.b16 %v1163, %v1162
        %v1169 = vsel %vm859, %v1155, 0
        %1171 = vmatpush.bf16.msra.mxu0 0
        %1172 = vmatpush.bf16.msra.mxu0 0
        %1173 = vmatpush.bf16.msra.mxu0 0
        %1174 = vmatpush.bf16.msra.mxu0 0
        %1175 = vmatpush.bf16.msra.mxu0 0
        %1176 = vmatpush.bf16.msra.mxu0 0
        %1177 = vmatpush.bf16.msra.mxu0 %v1165
        %1178 = vmatpush.bf16.msra.mxu0 %v1164
        %1179 = vmatmul.bf16.gmra.mxu0 %v1169
        %v1180 = vpop.f32.mrf.mxu0
        %v1181 = vadd.f32 0.0, %v1180
        %v1182 = vpop.f32.mrf.mxu0
        %1183 = vdwg.mxu0
        %v1184 = vpack.c.bf16 %v1181, %v1181
        %s1185 = scalar_lea.vmem %s5, 48
        %v1186 = vld [vmem:[%s1185] sm:$0xf]
        %v1187 = vld [vmem:[%s1185 + $0x4] sm:$0xf]
        %v1188 = vld [vmem:[%s1185 + $0x8] sm:$0xf]
        %v1189 = vld [vmem:[%s1185 + $0xc] sm:$0xf]
        %v1194 = vunpack.c.l.b16 %v1186
        %v1195 = vunpack.c.l.b16 %v1187
        %v1196 = vunpack.c.l.b16 %v1188
        %v1197 = vunpack.c.l.b16 %v1189
        %v1198 = vpack.c.b16 %v1195, %v1194
        %v1199 = vpack.c.b16 %v1197, %v1196
        %1202 = vmatpush.bf16.msra.mxu0 0
        %1203 = vmatpush.bf16.msra.mxu0 0
        %1204 = vmatpush.bf16.msra.mxu0 0
        %1205 = vmatpush.bf16.msra.mxu0 0
        %1206 = vmatpush.bf16.msra.mxu0 0
        %1207 = vmatpush.bf16.msra.mxu0 0
        %1208 = vmatpush.bf16.msra.mxu0 %v1199
        %1209 = vmatpush.bf16.msra.mxu0 %v1198
        %1210 = vmatmul.bf16.gmra.mxu0 %v1169
        %v1211 = vpop.f32.mrf.mxu0
        %v1212 = vadd.f32 0.0, %v1211
        %v1213 = vpop.f32.mrf.mxu0
        %1214 = vdwg.mxu0
        %s1215 = scalar_lea.vmem %s5, 64
        %v1216 = vld [vmem:[%s1215] sm:$0xf]
        %v1217 = vld [vmem:[%s1215 + $0x4] sm:$0xf]
        %v1218 = vld [vmem:[%s1215 + $0x8] sm:$0xf]
        %v1219 = vld [vmem:[%s1215 + $0xc] sm:$0xf]
        %v1220 = vpack.c.bf16 %v1212, %v1212
        %v1225 = vunpack.c.l.b16 %v1216
        %v1226 = vunpack.c.l.b16 %v1217
        %v1227 = vunpack.c.l.b16 %v1218
        %v1228 = vunpack.c.l.b16 %v1219
        %v1229 = vpack.c.b16 %v1226, %v1225
        %v1230 = vpack.c.b16 %v1228, %v1227
        %v1234 = vsel %vm859, %v1220, 0
        %1236 = vmatpush.bf16.msra.mxu0 0
        %1237 = vmatpush.bf16.msra.mxu0 0
        %1238 = vmatpush.bf16.msra.mxu0 0
        %1239 = vmatpush.bf16.msra.mxu0 0
        %1240 = vmatpush.bf16.msra.mxu0 0
        %1241 = vmatpush.bf16.msra.mxu0 0
        %1242 = vmatpush.bf16.msra.mxu0 %v1230
        %1243 = vmatpush.bf16.msra.mxu0 %v1229
        %1244 = vmatmul.bf16.gmra.mxu0 %v1234
        %v1245 = vpop.f32.mrf.mxu0
        %v1246 = vadd.f32 0.0, %v1245
        %v1247 = vpop.f32.mrf.mxu0
        %1248 = vdwg.mxu0
        %v1249 = vpack.c.bf16 %v1246, %v1246
        %1250 = vrot.lane.b32.xlu0 %v1040, 96
        %v1251 = vpop.permute.xlu0 %1250
        %1252 = vrot.lane.b32.xlu0 %v1041, 96
        %v1253 = vpop.permute.xlu0 %1252
        %1254 = vrot.lane.b32.xlu0 %v1042, 96
        %v1255 = vpop.permute.xlu0 %1254
        %1256 = vrot.lane.b32.xlu0 %v1043, 96
        %v1257 = vpop.permute.xlu0 %1256
        %v1259 = vsel %vm859, %v1184, 0
        %v1262 = vsel %vm859, %v1251, 0
        %v1265 = vsel %vm859, %v1253, 0
        %v1268 = vsel %vm859, %v1255, 0
        %v1271 = vsel %vm859, %v1257, 0
        %1273 = vmatpush.bf16.xpose.msra.mxu0 0
        %1274 = vmatpush.bf16.xpose.msra.mxu0 0
        %1275 = vmatpush.bf16.xpose.msra.mxu0 0
        %1276 = vmatpush.bf16.xpose.msra.mxu0 0
        %1277 = vmatpush.bf16.xpose.msra.mxu0 %v1271
        %1278 = vmatpush.bf16.xpose.msra.mxu0 %v1268
        %1279 = vmatpush.bf16.xpose.msra.mxu0 %v1265
        %1280 = vmatpush.bf16.xpose.msra.mxu0 %v1262
        %1281 = vmatmul.bf16.gmra.mxu0 %v1259
        %v1282 = vpop.f32.mrf.mxu0
        %v1283 = vadd.f32 0.0, %v1282
        %v1284 = vpop.f32.mrf.mxu0
        %1285 = vdwg.mxu0
        %v1286 = vmul.f32 %v1283, 0.17677669
        %v1287 = vsel %vm1073, %v1286, -inf
        %v1288 = vrot.slane %v1287, 4
        %v1289 = vmax.f32 %v1287, %v1288
        %v1290 = vrot.slane %v1289, 2
        %v1291 = vmax.f32 %v1289, %v1290
        %v1292 = vrot.slane %v1291, 1
        %v1293 = vmax.f32 %v1291, %v1292
        %v1294 = vsub.f32 %v1286, %v1293
        %v1295 = vmul.f32 %v1294, 1.442695
        %v1296 = vpow.pop %v1295
        %v1297 = vsel %vm1073, %v1296, 0.0
        %v1298 = vrot.slane %v1297, 4
        %v1299 = vadd.f32 %v1297, %v1298
        %v1300 = vrot.slane %v1299, 2
        %v1301 = vadd.f32 %v1299, %v1300
        %v1302 = vrot.slane %v1301, 1
        %v1303 = vadd.f32 %v1301, %v1302
        %v1304 = vrcp.pop %v1303
        %v1305 = vmul.f32 %v1303, %v1304
        %v1306 = vsub.f32 1.0, %v1305
        %v1307 = vmul.f32 %v1304, %v1306
        %v1308 = vadd.f32 %v1304, %v1307
        %vm1309 = vweird.f32 %v1303
        %vm1310 = vweird.f32 %v1304
        %vm1311 = vmor %vm1309, %vm1310
        %v1312 = vsel %vm1311, %v1304, %v1308
        %v1313 = vand.u32 2147483647, %v1303
        %vm1314 = vcmp.eq.f32.partialorder %v1313, 8.507059e+37
        %v1315 = vand.u32 %v1303, 2147483648
        %v1316 = vor.u32 1.1754944e-38, %v1315
        %v1317 = vsel %vm1314, %v1316, %v1312
        %v1318 = vmul.f32 %v1296, %v1317
        %v1319 = vpack.c.bf16 %v1318, %v1318
        %1320 = vxpose.xlu0.c.b16.start [1/8] %v1319, 128
        %1321 = vxpose.xlu0.c.b16.cont [2/8] 0, 128
        %1322 = vxpose.xlu0.c.b16.cont [3/8] 0, 128
        %1323 = vxpose.xlu0.c.b16.cont [4/8] 0, 128
        %1324 = vxpose.xlu0.c.b16.cont [5/8] 0, 128
        %1325 = vxpose.xlu0.c.b16.cont [6/8] 0, 128
        %1326 = vxpose.xlu0.c.b16.cont [7/8] 0, 128
        %1327 = vxpose.xlu0.c.b16.end [8/8] 0, 128
        %v1328 = vpop.trf.xlu0
        %v1329 = vpop.trf.xlu0
        %v1330 = vpop.trf.xlu0
        %v1331 = vpop.trf.xlu0
        %v1332 = vpop.trf.xlu0
        %v1333 = vpop.trf.xlu0
        %v1334 = vpop.trf.xlu0
        %v1335 = vpop.trf.xlu0
        %vm1336 = vcmask 64512
        %v1338 = vsel %vm1336, %v1328, 0
        %v1341 = vsel %vm1336, %v1329, 0
        %v1344 = vsel %vm1336, %v1330, 0
        %v1347 = vsel %vm1336, %v1331, 0
        %vm1349 = vcmask 1043456
        %v1351 = vsel %vm1349, %v1249, 0
        %1353 = vmatpush.bf16.msra.mxu0 0
        %1354 = vmatpush.bf16.msra.mxu0 0
        %1355 = vmatpush.bf16.msra.mxu0 0
        %1356 = vmatpush.bf16.msra.mxu0 0
        %1357 = vmatpush.bf16.msra.mxu0 0
        %1358 = vmatpush.bf16.msra.mxu0 0
        %1359 = vmatpush.bf16.msra.mxu0 0
        %1360 = vmatpush.bf16.msra.mxu0 %v1351
        %1361 = vmatmul.bf16.gmra.mxu0 %v1338
        %v1362 = vpop.f32.mrf.mxu0
        %v1363 = vadd.f32 0.0, %v1362
        %v1364 = vpop.f32.mrf.mxu0
        %v1365 = vadd.f32 0.0, %v1364
        %1366 = vmatmul.bf16.gmra.mxu0 %v1341
        %v1367 = vpop.f32.mrf.mxu0
        %v1368 = vadd.f32 0.0, %v1367
        %v1369 = vpop.f32.mrf.mxu0
        %v1370 = vadd.f32 0.0, %v1369
        %1371 = vmatmul.bf16.gmra.mxu0 %v1344
        %v1372 = vpop.f32.mrf.mxu0
        %v1373 = vadd.f32 0.0, %v1372
        %v1374 = vpop.f32.mrf.mxu0
        %v1375 = vadd.f32 0.0, %v1374
        %1376 = vmatmul.bf16.gmra.mxu0 %v1347
        %v1377 = vpop.f32.mrf.mxu0
        %v1378 = vadd.f32 0.0, %v1377
        %v1379 = vpop.f32.mrf.mxu0
        %v1380 = vadd.f32 0.0, %v1379
        %1381 = vdwg.mxu0
        %v1382 = vpack.c.bf16 %v1363, %v1363
        %v1383 = vpack.c.bf16 %v1365, %v1365
        %v1384 = vpack.c.bf16 %v1368, %v1368
        %v1385 = vpack.c.bf16 %v1370, %v1370
        %v1386 = vpack.c.bf16 %v1373, %v1373
        %v1387 = vpack.c.bf16 %v1375, %v1375
        %v1388 = vpack.c.bf16 %v1378, %v1378
        %v1389 = vpack.c.bf16 %v1380, %v1380
        %v1390 = vunpack.c.l.bf16 %v1382
        %v1391 = vunpack.c.l.bf16 %v1383
        %v1392 = vunpack.c.l.bf16 %v1384
        %v1393 = vunpack.c.l.bf16 %v1385
        %v1394 = vunpack.c.l.bf16 %v1386
        %v1395 = vunpack.c.l.bf16 %v1387
        %v1396 = vunpack.c.l.bf16 %v1388
        %v1397 = vunpack.c.l.bf16 %v1389
        %v1398 = vadd.f32 %v815, %v1390
        %v1399 = vadd.f32 %v816, %v1391
        %v1400 = vadd.f32 %v817, %v1392
        %v1401 = vadd.f32 %v818, %v1393
        %v1402 = vadd.f32 %v819, %v1394
        %v1403 = vadd.f32 %v820, %v1395
        %v1404 = vadd.f32 %v821, %v1396
        %v1405 = vadd.f32 %v822, %v1397
        %v1406 = vpack.c.bf16 %v1398, %v1398
        %v1407 = vpack.c.bf16 %v1399, %v1399
        %v1408 = vpack.c.bf16 %v1400, %v1400
        %v1409 = vpack.c.bf16 %v1401, %v1401
        %v1410 = vpack.c.bf16 %v1402, %v1402
        %v1411 = vpack.c.bf16 %v1403, %v1403
        %v1412 = vpack.c.bf16 %v1404, %v1404
        %v1413 = vpack.c.bf16 %v1405, %v1405
        %vm1414 = vcmask 257024
        %1415 = vst.msk [vmem:[%s796] sm:$0xf] %vm1414, %v1406
        %1416 = vst.msk [vmem:[%s796 + $0x4] sm:$0xf] %vm1414, %v1407
        %1417 = vst.msk [vmem:[%s796 + $0x8] sm:$0xf] %vm1414, %v1408
        %1418 = vst.msk [vmem:[%s796 + $0xc] sm:$0xf] %vm1414, %v1409
        %1419 = vst.msk [vmem:[%s796 + $0x10] sm:$0xf] %vm1414, %v1410
        %1420 = vst.msk [vmem:[%s796 + $0x14] sm:$0xf] %vm1414, %v1411
        %1421 = vst.msk [vmem:[%s796 + $0x18] sm:$0xf] %vm1414, %v1412
        %1422 = vst.msk [vmem:[%s796 + $0x1c] sm:$0xf] %vm1414, %v1413
        %1423 = vst.msk [vmem:[%s762] sm:$0xff] %vm859, %v1149
        %v1424 = vld [vmem:[#allocation10] sm:$0xf]
        %v1425 = vld [vmem:[#allocation10 + $0x4] sm:$0xf]
        %v1426 = vld [vmem:[#allocation10 + $0x8] sm:$0xf]
        %v1427 = vld [vmem:[#allocation10 + $0xc] sm:$0xf]
        %v1428 = vld [vmem:[%s13] sm:$0x1]
        %v1433 = vunpack.c.l.b16 %v1424
        %v1434 = vunpack.c.l.b16 %v1425
        %v1435 = vunpack.c.l.b16 %v1426
        %v1436 = vunpack.c.l.b16 %v1427
        %v1437 = vpack.c.b16 %v1434, %v1433
        %v1438 = vpack.c.b16 %v1436, %v1435
        %1441 = vmatpush.bf16.msra.mxu0 0
        %1442 = vmatpush.bf16.msra.mxu0 0
        %1443 = vmatpush.bf16.msra.mxu0 0
        %1444 = vmatpush.bf16.msra.mxu0 0
        %1445 = vmatpush.bf16.msra.mxu0 0
        %1446 = vmatpush.bf16.msra.mxu0 0
        %1447 = vmatpush.bf16.msra.mxu0 %v1438
        %1448 = vmatpush.bf16.msra.mxu0 %v1437
        %1449 = vmatmul.bf16.gmra.mxu0 %v1169
        %v1450 = vpop.f32.mrf.mxu0
        %v1451 = vadd.f32 %v1428, %v1450
        %v1452 = vpop.f32.mrf.mxu0
        %1453 = vdwg.mxu0
        %v1454 = vmax.f32 %v1451, 0.0
        %v1455 = vpack.c.bf16 %v1454, %v1454
        %v1456 = vld [vmem:[#allocation11] sm:$0xf]
        %v1457 = vld [vmem:[#allocation11 + $0x4] sm:$0xf]
        %v1458 = vld [vmem:[#allocation11 + $0x8] sm:$0xf]
        %v1459 = vld [vmem:[#allocation11 + $0xc] sm:$0xf]
        %v1460 = vld [vmem:[%s15] sm:$0x1]
        %v1465 = vunpack.c.l.b16 %v1456
        %v1466 = vunpack.c.l.b16 %v1457
        %v1467 = vunpack.c.l.b16 %v1458
        %v1468 = vunpack.c.l.b16 %v1459
        %v1469 = vpack.c.b16 %v1466, %v1465
        %v1470 = vpack.c.b16 %v1468, %v1467
        %v1474 = vsel %vm859, %v1455, 0
        %1476 = vmatpush.bf16.msra.mxu0 0
        %1477 = vmatpush.bf16.msra.mxu0 0
        %1478 = vmatpush.bf16.msra.mxu0 0
        %1479 = vmatpush.bf16.msra.mxu0 0
        %1480 = vmatpush.bf16.msra.mxu0 0
        %1481 = vmatpush.bf16.msra.mxu0 0
        %1482 = vmatpush.bf16.msra.mxu0 %v1470
        %1483 = vmatpush.bf16.msra.mxu0 %v1469
        %1484 = vmatmul.bf16.gmra.mxu0 %v1474
        %v1485 = vpop.f32.mrf.mxu0
        %v1486 = vadd.f32 %v1460, %v1485
        %v1487 = vpop.f32.mrf.mxu0
        %1488 = vdwg.mxu0
        %v1489 = vmax.f32 %v1486, 0.0
        %v1490 = vpack.c.bf16 %v1489, %v1489
        %v1491 = vld [vmem:[%s16] sm:$0xf]
        %v1492 = vld [vmem:[%s16 + $0x4] sm:$0xf]
        %v1493 = vld [vmem:[%s16 + $0x8] sm:$0xf]
        %v1494 = vld [vmem:[%s16 + $0xc] sm:$0xf]
        %v1495 = vld [vmem:[%s17] sm:$0x1]
        %v1500 = vunpack.c.l.b16 %v1491
        %v1501 = vunpack.c.l.b16 %v1492
        %v1502 = vunpack.c.l.b16 %v1493
        %v1503 = vunpack.c.l.b16 %v1494
        %v1504 = vpack.c.b16 %v1501, %v1500
        %v1505 = vpack.c.b16 %v1503, %v1502
        %v1509 = vsel %vm859, %v1490, 0
        %1511 = vmatpush.bf16.msra.mxu0 0
        %1512 = vmatpush.bf16.msra.mxu0 0
        %1513 = vmatpush.bf16.msra.mxu0 0
        %1514 = vmatpush.bf16.msra.mxu0 0
        %1515 = vmatpush.bf16.msra.mxu0 0
        %1516 = vmatpush.bf16.msra.mxu0 0
        %1517 = vmatpush.bf16.msra.mxu0 %v1505
        %1518 = vmatpush.bf16.msra.mxu0 %v1504
        %1519 = vmatmul.bf16.gmra.mxu0 %v1509
        %v1520 = vpop.f32.mrf.mxu0
        %v1521 = vadd.f32 %v1495, %v1520
        %v1522 = vpop.f32.mrf.mxu0
        %1523 = vdwg.mxu0
        %vm1524 = vcmask 24576
        %1525 = vst.msk [vmem:[%s782] sm:$0x1] %vm1524, %v1521
        %v1526 = vld [vmem:[%s6] sm:$0xf]
        %v1527 = vld [vmem:[%s6 + $0x4] sm:$0xf]
        %v1528 = vld [vmem:[%s6 + $0x8] sm:$0xf]
        %v1529 = vld [vmem:[%s6 + $0xc] sm:$0xf]
        %v1530 = vld [vmem:[#allocation5] sm:$0x1]
        %v1531 = vshrl.u32 %v1155, 16
        %v1537 = vunpack.c.l.b16 %v1526
        %v1538 = vunpack.c.l.b16 %v1527
        %v1539 = vunpack.c.l.b16 %v1528
        %v1540 = vunpack.c.l.b16 %v1529
        %v1541 = vpack.c.b16 %v1538, %v1537
        %v1542 = vpack.c.b16 %v1540, %v1539
        %v1546 = vsel %vm859, %v1531, 0
        %1548 = vmatpush.bf16.msra.mxu0 0
        %1549 = vmatpush.bf16.msra.mxu0 0
        %1550 = vmatpush.bf16.msra.mxu0 0
        %1551 = vmatpush.bf16.msra.mxu0 0
        %1552 = vmatpush.bf16.msra.mxu0 0
        %1553 = vmatpush.bf16.msra.mxu0 0
        %1554 = vmatpush.bf16.msra.mxu0 %v1542
        %1555 = vmatpush.bf16.msra.mxu0 %v1541
        %1556 = vmatmul.bf16.gmra.mxu0 %v1546
        %v1557 = vpop.f32.mrf.mxu0
        %v1558 = vadd.f32 %v1530, %v1557
        %v1559 = vpop.f32.mrf.mxu0
        %1560 = vdwg.mxu0
        %v1561 = vmax.f32 %v1558, 0.0
        %v1562 = vpack.c.bf16 %v1561, %v1561
        %v1563 = vld [vmem:[#allocation7] sm:$0xf]
        %v1564 = vld [vmem:[#allocation7 + $0x4] sm:$0xf]
        %v1565 = vld [vmem:[#allocation7 + $0x8] sm:$0xf]
        %v1566 = vld [vmem:[#allocation7 + $0xc] sm:$0xf]
        %v1567 = vld [vmem:[%s9] sm:$0x1]
        %v1572 = vunpack.c.l.b16 %v1563
        %v1573 = vunpack.c.l.b16 %v1564
        %v1574 = vunpack.c.l.b16 %v1565
        %v1575 = vunpack.c.l.b16 %v1566
        %v1576 = vpack.c.b16 %v1573, %v1572
        %v1577 = vpack.c.b16 %v1575, %v1574
        %v1581 = vsel %vm859, %v1562, 0
        %1583 = vmatpush.bf16.msra.mxu0 0
        %1584 = vmatpush.bf16.msra.mxu0 0
        %1585 = vmatpush.bf16.msra.mxu0 0
        %1586 = vmatpush.bf16.msra.mxu0 0
        %1587 = vmatpush.bf16.msra.mxu0 0
        %1588 = vmatpush.bf16.msra.mxu0 0
        %1589 = vmatpush.bf16.msra.mxu0 %v1577
        %1590 = vmatpush.bf16.msra.mxu0 %v1576
        %1591 = vmatmul.bf16.gmra.mxu0 %v1581
        %v1592 = vpop.f32.mrf.mxu0
        %v1593 = vadd.f32 %v1567, %v1592
        %v1594 = vpop.f32.mrf.mxu0
        %1595 = vdwg.mxu0
        %v1596 = vmax.f32 %v1593, 0.0
        %v1597 = vpack.c.bf16 %v1596, %v1596
        %v1598 = vld [vmem:[%s10] sm:$0xf]
        %v1599 = vld [vmem:[%s10 + $0x4] sm:$0xf]
        %v1600 = vld [vmem:[%s10 + $0x8] sm:$0xf]
        %v1601 = vld [vmem:[%s10 + $0xc] sm:$0xf]
        %v1602 = vld [vmem:[#allocation8] sm:$0x1]
        %v1607 = vunpack.c.l.b16 %v1598
        %v1608 = vunpack.c.l.b16 %v1599
        %v1609 = vunpack.c.l.b16 %v1600
        %v1610 = vunpack.c.l.b16 %v1601
        %v1611 = vpack.c.b16 %v1608, %v1607
        %v1612 = vpack.c.b16 %v1610, %v1609
        %v1616 = vsel %vm859, %v1597, 0
        %1618 = vmatpush.bf16.msra.mxu0 0
        %1619 = vmatpush.bf16.msra.mxu0 0
        %1620 = vmatpush.bf16.msra.mxu0 0
        %1621 = vmatpush.bf16.msra.mxu0 0
        %1622 = vmatpush.bf16.msra.mxu0 0
        %1623 = vmatpush.bf16.msra.mxu0 0
        %1624 = vmatpush.bf16.msra.mxu0 %v1612
        %1625 = vmatpush.bf16.msra.mxu0 %v1611
        %1626 = vmatmul.bf16.gmra.mxu0 %v1616
        %v1627 = vpop.f32.mrf.mxu0
        %v1628 = vadd.f32 %v1602, %v1627
        %v1629 = vpop.f32.mrf.mxu0
        %1630 = vdwg.mxu0
        %1631 = vst.msk [vmem:[%s776] sm:$0x1] %vm1524, %v1628
        %s1632 = scalar_lea.vmem %s6, 16
        %v1633 = vld [vmem:[%s1632] sm:$0xf]
        %v1634 = vld [vmem:[%s1632 + $0x4] sm:$0xf]
        %v1635 = vld [vmem:[%s1632 + $0x8] sm:$0xf]
        %v1636 = vld [vmem:[%s1632 + $0xc] sm:$0xf]
        %v1637 = vld [vmem:[#allocation5 + $0x1] sm:$0x1]
        %v1639 = vrot.slane %v1155, 1
        %v1644 = vunpack.c.l.b16 %v1633
        %v1645 = vunpack.c.l.b16 %v1634
        %v1646 = vunpack.c.l.b16 %v1635
        %v1647 = vunpack.c.l.b16 %v1636
        %v1648 = vpack.c.b16 %v1645, %v1644
        %v1649 = vpack.c.b16 %v1647, %v1646
        %v1653 = vsel %vm859, %v1639, 0
        %1655 = vmatpush.bf16.msra.mxu0 0
        %1656 = vmatpush.bf16.msra.mxu0 0
        %1657 = vmatpush.bf16.msra.mxu0 0
        %1658 = vmatpush.bf16.msra.mxu0 0
        %1659 = vmatpush.bf16.msra.mxu0 0
        %1660 = vmatpush.bf16.msra.mxu0 0
        %1661 = vmatpush.bf16.msra.mxu0 %v1649
        %1662 = vmatpush.bf16.msra.mxu0 %v1648
        %1663 = vmatmul.bf16.gmra.mxu0 %v1653
        %v1664 = vpop.f32.mrf.mxu0
        %v1665 = vadd.f32 %v1637, %v1664
        %v1666 = vpop.f32.mrf.mxu0
        %1667 = vdwg.mxu0
        %v1668 = vmax.f32 %v1665, 0.0
        %v1669 = vpack.c.bf16 %v1668, %v1668
        %s1670 = scalar_lea.vmem [#allocation7], 16
        %v1671 = vld [vmem:[%s1670] sm:$0xf]
        %v1672 = vld [vmem:[%s1670 + $0x4] sm:$0xf]
        %v1673 = vld [vmem:[%s1670 + $0x8] sm:$0xf]
        %v1674 = vld [vmem:[%s1670 + $0xc] sm:$0xf]
        %v1675 = vld [vmem:[%s9 + $0x1] sm:$0x1]
        %v1680 = vunpack.c.l.b16 %v1671
        %v1681 = vunpack.c.l.b16 %v1672
        %v1682 = vunpack.c.l.b16 %v1673
        %v1683 = vunpack.c.l.b16 %v1674
        %v1684 = vpack.c.b16 %v1681, %v1680
        %v1685 = vpack.c.b16 %v1683, %v1682
        %v1689 = vsel %vm859, %v1669, 0
        %1691 = vmatpush.bf16.msra.mxu0 0
        %1692 = vmatpush.bf16.msra.mxu0 0
        %1693 = vmatpush.bf16.msra.mxu0 0
        %1694 = vmatpush.bf16.msra.mxu0 0
        %1695 = vmatpush.bf16.msra.mxu0 0
        %1696 = vmatpush.bf16.msra.mxu0 0
        %1697 = vmatpush.bf16.msra.mxu0 %v1685
        %1698 = vmatpush.bf16.msra.mxu0 %v1684
        %1699 = vmatmul.bf16.gmra.mxu0 %v1689
        %v1700 = vpop.f32.mrf.mxu0
        %v1701 = vadd.f32 %v1675, %v1700
        %v1702 = vpop.f32.mrf.mxu0
        %1703 = vdwg.mxu0
        %v1704 = vmax.f32 %v1701, 0.0
        %v1705 = vpack.c.bf16 %v1704, %v1704
        %s1706 = scalar_lea.vmem %s10, 16
        %v1707 = vld [vmem:[%s1706] sm:$0xf]
        %v1708 = vld [vmem:[%s1706 + $0x4] sm:$0xf]
        %v1709 = vld [vmem:[%s1706 + $0x8] sm:$0xf]
        %v1710 = vld [vmem:[%s1706 + $0xc] sm:$0xf]
        %v1711 = vld [vmem:[#allocation8 + $0x1] sm:$0x1]
        %v1716 = vunpack.c.l.b16 %v1707
        %v1717 = vunpack.c.l.b16 %v1708
        %v1718 = vunpack.c.l.b16 %v1709
        %v1719 = vunpack.c.l.b16 %v1710
        %v1720 = vpack.c.b16 %v1717, %v1716
        %v1721 = vpack.c.b16 %v1719, %v1718
        %v1725 = vsel %vm859, %v1705, 0
        %1727 = vmatpush.bf16.msra.mxu0 0
        %1728 = vmatpush.bf16.msra.mxu0 0
        %1729 = vmatpush.bf16.msra.mxu0 0
        %1730 = vmatpush.bf16.msra.mxu0 0
        %1731 = vmatpush.bf16.msra.mxu0 0
        %1732 = vmatpush.bf16.msra.mxu0 0
        %1733 = vmatpush.bf16.msra.mxu0 %v1721
        %1734 = vmatpush.bf16.msra.mxu0 %v1720
        %1735 = vmatmul.bf16.gmra.mxu0 %v1725
        %v1736 = vpop.f32.mrf.mxu0
        %v1737 = vadd.f32 %v1711, %v1736
        %v1738 = vpop.f32.mrf.mxu0
        %1739 = vdwg.mxu0
        %1740 = vst.msk [vmem:[%s776 + $0x1] sm:$0x1] %vm1524, %v1737
        %s1741 = scalar_lea.vmem %s6, 32
        %v1742 = vld [vmem:[%s1741] sm:$0xf]
        %v1743 = vld [vmem:[%s1741 + $0x4] sm:$0xf]
        %v1744 = vld [vmem:[%s1741 + $0x8] sm:$0xf]
        %v1745 = vld [vmem:[%s1741 + $0xc] sm:$0xf]
        %v1746 = vld [vmem:[#allocation5 + $0x2] sm:$0x1]
        %v1747 = vrot.slane %v1531, 1
        %v1752 = vunpack.c.l.b16 %v1742
        %v1753 = vunpack.c.l.b16 %v1743
        %v1754 = vunpack.c.l.b16 %v1744
        %v1755 = vunpack.c.l.b16 %v1745
        %v1756 = vpack.c.b16 %v1753, %v1752
        %v1757 = vpack.c.b16 %v1755, %v1754
        %v1761 = vsel %vm859, %v1747, 0
        %1763 = vmatpush.bf16.msra.mxu0 0
        %1764 = vmatpush.bf16.msra.mxu0 0
        %1765 = vmatpush.bf16.msra.mxu0 0
        %1766 = vmatpush.bf16.msra.mxu0 0
        %1767 = vmatpush.bf16.msra.mxu0 0
        %1768 = vmatpush.bf16.msra.mxu0 0
        %1769 = vmatpush.bf16.msra.mxu0 %v1757
        %1770 = vmatpush.bf16.msra.mxu0 %v1756
        %1771 = vmatmul.bf16.gmra.mxu0 %v1761
        %v1772 = vpop.f32.mrf.mxu0
        %v1773 = vadd.f32 %v1746, %v1772
        %v1774 = vpop.f32.mrf.mxu0
        %1775 = vdwg.mxu0
        %v1776 = vmax.f32 %v1773, 0.0
        %v1777 = vpack.c.bf16 %v1776, %v1776
        %s1778 = scalar_lea.vmem [#allocation7], 32
        %v1779 = vld [vmem:[%s1778] sm:$0xf]
        %v1780 = vld [vmem:[%s1778 + $0x4] sm:$0xf]
        %v1781 = vld [vmem:[%s1778 + $0x8] sm:$0xf]
        %v1782 = vld [vmem:[%s1778 + $0xc] sm:$0xf]
        %v1783 = vld [vmem:[%s9 + $0x2] sm:$0x1]
        %v1788 = vunpack.c.l.b16 %v1779
        %v1789 = vunpack.c.l.b16 %v1780
        %v1790 = vunpack.c.l.b16 %v1781
        %v1791 = vunpack.c.l.b16 %v1782
        %v1792 = vpack.c.b16 %v1789, %v1788
        %v1793 = vpack.c.b16 %v1791, %v1790
        %v1797 = vsel %vm859, %v1777, 0
        %1799 = vmatpush.bf16.msra.mxu0 0
        %1800 = vmatpush.bf16.msra.mxu0 0
        %1801 = vmatpush.bf16.msra.mxu0 0
        %1802 = vmatpush.bf16.msra.mxu0 0
        %1803 = vmatpush.bf16.msra.mxu0 0
        %1804 = vmatpush.bf16.msra.mxu0 0
        %1805 = vmatpush.bf16.msra.mxu0 %v1793
        %1806 = vmatpush.bf16.msra.mxu0 %v1792
        %1807 = vmatmul.bf16.gmra.mxu0 %v1797
        %v1808 = vpop.f32.mrf.mxu0
        %v1809 = vadd.f32 %v1783, %v1808
        %v1810 = vpop.f32.mrf.mxu0
        %1811 = vdwg.mxu0
        %v1812 = vmax.f32 %v1809, 0.0
        %v1813 = vpack.c.bf16 %v1812, %v1812
        %s1814 = scalar_lea.vmem %s10, 32
        %v1815 = vld [vmem:[%s1814] sm:$0xf]
        %v1816 = vld [vmem:[%s1814 + $0x4] sm:$0xf]
        %v1817 = vld [vmem:[%s1814 + $0x8] sm:$0xf]
        %v1818 = vld [vmem:[%s1814 + $0xc] sm:$0xf]
        %v1819 = vld [vmem:[#allocation8 + $0x2] sm:$0x1]
        %v1824 = vunpack.c.l.b16 %v1815
        %v1825 = vunpack.c.l.b16 %v1816
        %v1826 = vunpack.c.l.b16 %v1817
        %v1827 = vunpack.c.l.b16 %v1818
        %v1828 = vpack.c.b16 %v1825, %v1824
        %v1829 = vpack.c.b16 %v1827, %v1826
        %v1833 = vsel %vm859, %v1813, 0
        %1835 = vmatpush.bf16.msra.mxu0 0
        %1836 = vmatpush.bf16.msra.mxu0 0
        %1837 = vmatpush.bf16.msra.mxu0 0
        %1838 = vmatpush.bf16.msra.mxu0 0
        %1839 = vmatpush.bf16.msra.mxu0 0
        %1840 = vmatpush.bf16.msra.mxu0 0
        %1841 = vmatpush.bf16.msra.mxu0 %v1829
        %1842 = vmatpush.bf16.msra.mxu0 %v1828
        %1843 = vmatmul.bf16.gmra.mxu0 %v1833
        %v1844 = vpop.f32.mrf.mxu0
        %v1845 = vadd.f32 %v1819, %v1844
        %v1846 = vpop.f32.mrf.mxu0
        %1847 = vdwg.mxu0
        %1848 = vst.msk [vmem:[%s776 + $0x2] sm:$0x1] %vm1524, %v1845
        %s1849 = scalar_lea.vmem %s6, 48
        %v1850 = vld [vmem:[%s1849] sm:$0xf]
        %v1851 = vld [vmem:[%s1849 + $0x4] sm:$0xf]
        %v1852 = vld [vmem:[%s1849 + $0x8] sm:$0xf]
        %v1853 = vld [vmem:[%s1849 + $0xc] sm:$0xf]
        %v1854 = vld [vmem:[#allocation5 + $0x3] sm:$0x1]
        %v1855 = vrot.slane %v1155, 2
        %v1860 = vunpack.c.l.b16 %v1850
        %v1861 = vunpack.c.l.b16 %v1851
        %v1862 = vunpack.c.l.b16 %v1852
        %v1863 = vunpack.c.l.b16 %v1853
        %v1864 = vpack.c.b16 %v1861, %v1860
        %v1865 = vpack.c.b16 %v1863, %v1862
        %v1869 = vsel %vm859, %v1855, 0
        %1871 = vmatpush.bf16.msra.mxu0 0
        %1872 = vmatpush.bf16.msra.mxu0 0
        %1873 = vmatpush.bf16.msra.mxu0 0
        %1874 = vmatpush.bf16.msra.mxu0 0
        %1875 = vmatpush.bf16.msra.mxu0 0
        %1876 = vmatpush.bf16.msra.mxu0 0
        %1877 = vmatpush.bf16.msra.mxu0 %v1865
        %1878 = vmatpush.bf16.msra.mxu0 %v1864
        %1879 = vmatmul.bf16.gmra.mxu0 %v1869
        %v1880 = vpop.f32.mrf.mxu0
        %v1881 = vadd.f32 %v1854, %v1880
        %v1882 = vpop.f32.mrf.mxu0
        %1883 = vdwg.mxu0
        %v1884 = vmax.f32 %v1881, 0.0
        %v1885 = vpack.c.bf16 %v1884, %v1884
        %s1886 = scalar_lea.vmem [#allocation7], 48
        %v1887 = vld [vmem:[%s1886] sm:$0xf]
        %v1888 = vld [vmem:[%s1886 + $0x4] sm:$0xf]
        %v1889 = vld [vmem:[%s1886 + $0x8] sm:$0xf]
        %v1890 = vld [vmem:[%s1886 + $0xc] sm:$0xf]
        %v1891 = vld [vmem:[%s9 + $0x3] sm:$0x1]
        %v1896 = vunpack.c.l.b16 %v1887
        %v1897 = vunpack.c.l.b16 %v1888
        %v1898 = vunpack.c.l.b16 %v1889
        %v1899 = vunpack.c.l.b16 %v1890
        %v1900 = vpack.c.b16 %v1897, %v1896
        %v1901 = vpack.c.b16 %v1899, %v1898
        %v1905 = vsel %vm859, %v1885, 0
        %1907 = vmatpush.bf16.msra.mxu0 0
        %1908 = vmatpush.bf16.msra.mxu0 0
        %1909 = vmatpush.bf16.msra.mxu0 0
        %1910 = vmatpush.bf16.msra.mxu0 0
        %1911 = vmatpush.bf16.msra.mxu0 0
        %1912 = vmatpush.bf16.msra.mxu0 0
        %1913 = vmatpush.bf16.msra.mxu0 %v1901
        %1914 = vmatpush.bf16.msra.mxu0 %v1900
        %1915 = vmatmul.bf16.gmra.mxu0 %v1905
        %v1916 = vpop.f32.mrf.mxu0
        %v1917 = vadd.f32 %v1891, %v1916
        %v1918 = vpop.f32.mrf.mxu0
        %1919 = vdwg.mxu0
        %v1920 = vmax.f32 %v1917, 0.0
        %v1921 = vpack.c.bf16 %v1920, %v1920
        %s1922 = scalar_lea.vmem %s10, 48
        %v1923 = vld [vmem:[%s1922] sm:$0xf]
        %v1924 = vld [vmem:[%s1922 + $0x4] sm:$0xf]
        %v1925 = vld [vmem:[%s1922 + $0x8] sm:$0xf]
        %v1926 = vld [vmem:[%s1922 + $0xc] sm:$0xf]
        %v1927 = vld [vmem:[#allocation8 + $0x3] sm:$0x1]
        %v1932 = vunpack.c.l.b16 %v1923
        %v1933 = vunpack.c.l.b16 %v1924
        %v1934 = vunpack.c.l.b16 %v1925
        %v1935 = vunpack.c.l.b16 %v1926
        %v1936 = vpack.c.b16 %v1933, %v1932
        %v1937 = vpack.c.b16 %v1935, %v1934
        %v1941 = vsel %vm859, %v1921, 0
        %1943 = vmatpush.bf16.msra.mxu0 0
        %1944 = vmatpush.bf16.msra.mxu0 0
        %1945 = vmatpush.bf16.msra.mxu0 0
        %1946 = vmatpush.bf16.msra.mxu0 0
        %1947 = vmatpush.bf16.msra.mxu0 0
        %1948 = vmatpush.bf16.msra.mxu0 0
        %1949 = vmatpush.bf16.msra.mxu0 %v1937
        %1950 = vmatpush.bf16.msra.mxu0 %v1936
        %1951 = vmatmul.bf16.gmra.mxu0 %v1941
        %v1952 = vpop.f32.mrf.mxu0
        %v1953 = vadd.f32 %v1927, %v1952
        %v1954 = vpop.f32.mrf.mxu0
        %1955 = vdwg.mxu0
        %1956 = vst.msk [vmem:[%s776 + $0x3] sm:$0x1] %vm1524, %v1953
        %s1957 = sand.u32 %s439, 1
        %s1958 = scalar_lea.sflag [#allocation4], %s1957
        %s1959 = sand.u32 %s439, 1
        %s1960 = smul.addr %s1959, 8
        %s1961 = scalar_lea.vmem [#allocation13], %s1960
        %p1962 = scmp.lt.s32.totalorder %s43, 1
        %s1963 = scalar_select %p1962, %s43, 1
        %s1964 = smul.addr %s1963, 8
        %s1965 = smul.addr %s1964, 4
        %s1966 = scalar_lea.vmem %s19, %s1965
        %s1967 = sand.u32 %s43, 1
        %s1968 = scalar_lea.sflag [#allocation15], %s1967
        %s1969 = sand.u32 %s491, 1
        %s1970 = smul.addr %s1969, 4
        %s1971 = scalar_lea.vmem [#allocation14], %s1970
        %s1972 = sand.u32 %s43, 1
        %s1973 = scalar_lea.sflag [#allocation15], %s1972
        %s1974 = sand.u32 %s517, 1
        %s1975 = scalar_lea.vmem [#allocation16], %s1974
        // Predicated region
        $region117: #{tpu_custom_call.1} parent=91 // pred_check
          %p1976 = pneg %p449
        $region118: #{tpu_custom_call.1} parent=91 // pred_check_branch
          %1978 = sbr.rel (%p1976) target = $region120
        $region119: #{tpu_custom_call.1} parent=91 // pred_region
          %1980 = vsyncadd %s1958, 0
          %s1981 = smul.addr %s43, 8
          %s1982 = scalar_lea.hbm %s18, %s1981
          %s1984 = sshll.u32 %s1961, 4
          %s1985 = int_to_ptr.vmem [resolvable:$true] %s1984
          %s1986 = sshll.u32 %s1982, 4
          %s1987 = int_to_ptr.hbm [resolvable:$true] %s1986
          %1989 = dma.vmem_to_hbm [thread:$0]  %s1985, 128, %s1987, %s1958
        $region120: #{tpu_custom_call.1} parent=91 // pred_fallthru
          _
        // Predicated region
        $region121: #{tpu_custom_call.1} parent=91 // pred_check
          %p1990 = pneg %p475
        $region122: #{tpu_custom_call.1} parent=91 // pred_check_branch
          %1992 = sbr.rel (%p1990) target = $region124
        $region123: #{tpu_custom_call.1} parent=91 // pred_region
          _
        $region124: #{tpu_custom_call.1} parent=91 // pred_fallthru
          _
        // Predicated region
        $region125: #{tpu_custom_call.1} parent=91 // pred_check
          %p1993 = pneg %p501
        $region126: #{tpu_custom_call.1} parent=91 // pred_check_branch
          %1995 = sbr.rel (%p1993) target = $region128
        $region127: #{tpu_custom_call.1} parent=91 // pred_region
          %1997 = vsyncadd %s1968, 0
          %s1998 = smul.addr %s43, 4
          %s1999 = scalar_lea.hbm %s20, %s1998
          %s2001 = sshll.u32 %s1971, 4
          %s2002 = int_to_ptr.vmem [resolvable:$true] %s2001
          %s2003 = sshll.u32 %s1999, 4
          %s2004 = int_to_ptr.hbm [resolvable:$true] %s2003
          %2006 = dma.vmem_to_hbm [thread:$0]  %s2002, 64, %s2004, %s1968
        $region128: #{tpu_custom_call.1} parent=91 // pred_fallthru
          _
        // Predicated region
        $region129: #{tpu_custom_call.1} parent=91 // pred_check
          %p2007 = pneg %p527
        $region130: #{tpu_custom_call.1} parent=91 // pred_check_branch
          %2009 = sbr.rel (%p2007) target = $region132
        $region131: #{tpu_custom_call.1} parent=91 // pred_region
          %2011 = vsyncadd %s1973, 0
          %s2012 = scalar_lea.hbm %s21, %s43
          %s2014 = sshll.u32 %s1975, 4
          %s2015 = int_to_ptr.vmem [resolvable:$true] %s2014
          %s2016 = sshll.u32 %s2012, 4
          %s2017 = int_to_ptr.hbm [resolvable:$true] %s2016
          %2019 = dma.vmem_to_hbm [thread:$0]  %s2015, 16, %s2017, %s1973
        $region132: #{tpu_custom_call.1} parent=91 // pred_fallthru
          _
      $region92: #{tpu_custom_call.1} parent=5 // pred_fallthru
        _
      %p2020 = scmp.le.s32.totalorder 2, %s38
      // Predicated region
      $region133: #{tpu_custom_call.1} parent=5 // pred_check
        %p2021 = pneg %p2020
      $region134: #{tpu_custom_call.1} parent=5 // pred_check_branch
        %2023 = sbr.rel (%p2021) target = $region136
      $region135: #{tpu_custom_call.1} parent=5 // pred_region
        %s2024 = ssub.s32 %s38, 2
        // Predicated region
        $region137: #{tpu_custom_call.1} parent=135 // pred_check
          %p2025 = pneg %p455
        $region138: #{tpu_custom_call.1} parent=135 // pred_check_branch
          %2027 = sbr.rel (%p2025) target = $region140
        $region139: #{tpu_custom_call.1} parent=135 // pred_region
          %s2028 = sand.u32 %s440, 1
          %s2029 = scalar_lea.sflag [#allocation4], %s2028
          %s2030 = sand.u32 %s440, 1
          %s2031 = smul.addr %s2030, 8
          %s2032 = scalar_lea.vmem [#allocation13], %s2031
          %2034 = dma.done %s2029, 128
        $region140: #{tpu_custom_call.1} parent=135 // pred_fallthru
          _
        // Predicated region
        $region141: #{tpu_custom_call.1} parent=135 // pred_check
          %p2035 = pneg %p481
        $region142: #{tpu_custom_call.1} parent=135 // pred_check_branch
          %2037 = sbr.rel (%p2035) target = $region144
        $region143: #{tpu_custom_call.1} parent=135 // pred_region
          %p2038 = scmp.lt.s32.totalorder %s44, 1
          %s2039 = scalar_select %p2038, %s44, 1
          %s2040 = smul.addr %s2039, 8
          %s2041 = smul.addr %s2040, 4
          %s2042 = scalar_lea.vmem %s19, %s2041
        $region144: #{tpu_custom_call.1} parent=135 // pred_fallthru
          _
        // Predicated region
        $region145: #{tpu_custom_call.1} parent=135 // pred_check
          %p2043 = pneg %p507
        $region146: #{tpu_custom_call.1} parent=135 // pred_check_branch
          %2045 = sbr.rel (%p2043) target = $region148
        $region147: #{tpu_custom_call.1} parent=135 // pred_region
          %s2046 = sand.u32 %s44, 1
          %s2047 = scalar_lea.sflag [#allocation15], %s2046
          %s2048 = sand.u32 %s492, 1
          %s2049 = smul.addr %s2048, 4
          %s2050 = scalar_lea.vmem [#allocation14], %s2049
          %2052 = dma.done %s2047, 64
        $region148: #{tpu_custom_call.1} parent=135 // pred_fallthru
          _
        // Predicated region
        $region149: #{tpu_custom_call.1} parent=135 // pred_check
          %p2053 = pneg %p533
        $region150: #{tpu_custom_call.1} parent=135 // pred_check_branch
          %2055 = sbr.rel (%p2053) target = $region152
        $region151: #{tpu_custom_call.1} parent=135 // pred_region
          %s2056 = sand.u32 %s44, 1
          %s2057 = scalar_lea.sflag [#allocation15], %s2056
          %s2058 = sand.u32 %s518, 1
          %s2059 = scalar_lea.vmem [#allocation16], %s2058
          %2061 = dma.done %s2057, 16
        $region152: #{tpu_custom_call.1} parent=135 // pred_fallthru
          _
      $region136: #{tpu_custom_call.1} parent=5 // pred_fallthru
        _
    $region6: #{tpu_custom_call.1} parent=1 // loop_footer
      %s42 = sadd.s32 1, %s38
    $region7: #{tpu_custom_call.1} parent=1 // loop_footer_branch
      %37 = sbr.rel target = $region3
    $region8: #{tpu_custom_call.1} parent=1 // loop_exit
      _
    %2062 = vsyncpa [#allocation3], 1
    %s2063 = scalar_lea.sflag [#allocation3], 1
    %2064 = vsyncpa %s2063, 1
    %2065 = vsyncpa [#allocation6], 1
    %2066 = vsyncpa [#allocation9], 1
    %2067 = vsyncpa [#allocation12], 1
    %2068 = vsyncpa [#allocation4], 1
    %s2069 = scalar_lea.sflag [#allocation4], 1
    %2070 = vsyncpa %s2069, 1
    %2071 = vsyncpa [#allocation15], 1
    %s2072 = scalar_lea.sflag [#allocation15], 1
    %2073 = vsyncpa %s2072, 1

</llo_original>
